<compile_context>
chip_gen: v7x
topology: tpu7x:2x2x1
jax: 0.10.0
libtpu: 0.0.40
codegen_flags: <defaults>
</compile_context>

<pallas_src>
import functools
import math

import jax
import jax.numpy as jnp
from jax import lax
from jax.experimental import pallas as pl
from jax.experimental.pallas import tpu as pltpu

BN_EPS = 1e-5
LANES = 128


def _round_up(x, m):
    return (x + m - 1) // m * m


def _pick_tile_rows(H, W, max_acc_rows):
    """Largest divisor TH of H with TH*W <= max_acc_rows and a (..,8)-friendly block."""
    for th in range(H, 0, -1):
        if H % th:
            continue
        if th * W <= max_acc_rows and (th == H or (th * W) % 8 == 0):
            return th
    return H  # fallback: whole image per step


def _conv_rows(x_ref, w_ref, t, *, th_rows, w_cols):
    """f32 (TH*W, Cp) conv accumulator for row-tile `t` of the current image.

    x_ref: ((H+2)*W, 3*Cin) bf16 -- padded image, kx taps interleaved in channels.
    w_ref: (3, 3*Cin, Cp) bf16   -- w_ref[ky, kx*Cin+c, co].
    Output row r = oy_local*W + ox needs input rows (t*TH + oy_local + ky)*W + ox,
    i.e. a contiguous slice starting at t*TH*W + ky*W.
    """
    n_rows = th_rows * w_cols
    row0 = t * n_rows
    align = math.gcd(w_cols, 16)  # bf16 sublane tile; exact when W % 16 == 0
    acc = None
    for ky in range(3):
        start = row0 + ky * w_cols
        if align > 1:
            start = pl.multiple_of(start, align)
        xt = x_ref[pl.ds(start, n_rows), :]                    # (TH*W, 3*Cin) bf16
        d = jnp.dot(xt, w_ref[ky], preferred_element_type=jnp.float32)
        acc = d if acc is None else acc + d
    return acc


def _stats_kernel(x_ref, w_ref, stats_ref, *, th_rows, w_cols):
    """Pass 1: per-(image, row-tile) channel sum and sum-of-squares of the conv."""
    t = pl.program_id(1)
    acc = _conv_rows(x_ref, w_ref, t, th_rows=th_rows, w_cols=w_cols)
    s = jnp.sum(acc, axis=0, keepdims=True)                    # (1, Cp)
    ss = jnp.sum(acc * acc, axis=0, keepdims=True)             # (1, Cp)
    stats_ref[...] = jnp.concatenate([s, ss], axis=0)          # (2, Cp)


def _apply_kernel(x_ref, w_ref, scale_ref, shift_ref, o_ref, *, th_rows, w_cols):
    """Pass 2: recompute conv tile, apply folded BN affine (f32) and ReLU, store bf16."""
    t = pl.program_id(1)
    acc = _conv_rows(x_ref, w_ref, t, th_rows=th_rows, w_cols=w_cols)
    y = acc * scale_ref[...] + shift_ref[...]                  # (TH*W, Cp) f32
    o_ref[...] = jnp.maximum(y, 0.0).astype(o_ref.dtype)


@functools.partial(jax.jit, static_argnames=("max_acc_rows",))
def conv_bn_relu(x_nchw, w, b, gamma, beta, *, max_acc_rows=1024):
    """x_nchw: (N, Cin, H, W); w: (Cout, Cin, 3, 3); b/gamma/beta: (Cout,)."""
    del b  # exactly cancelled by training-mode BN mean subtraction
    N, Cin, H, W = x_nchw.shape
    Cout = w.shape[0]
    Cp = _round_up(Cout, LANES)          # lane-dense output channels
    K3 = 3 * Cin                         # packed contraction depth per ky-dot
    TH = _pick_tile_rows(H, W, max_acc_rows)
    T = H // TH
    n_rows = TH * W                      # output rows per grid step
    L = (H + 2) * W                      # flattened padded rows per image

    # ---- glue (bf16): NCHW -> padded NHWC with the 3 kx taps pre-interleaved ----
    xb = jnp.transpose(x_nchw.astype(jnp.bfloat16), (0, 2, 3, 1))   # (N,H,W,Cin)
    xp = jnp.pad(xb, ((0, 0), (1, 1), (1, 1), (0, 0)))              # (N,H+2,W+2,Cin)
    xk = jnp.concatenate([xp[:, :, kx:kx + W, :] for kx in range(3)], axis=-1)
    xk = xk.reshape(N, L, K3)                                       # (N,(H+2)*W,3Cin)

    # weights: (Cout,Cin,3,3) -> (3, 3*Cin, Cp) with index [ky, kx*Cin+c, co]
    w2 = jnp.transpose(w.astype(jnp.float32), (2, 3, 1, 0)).reshape(3, K3, Cout)
    w2 = jnp.pad(w2, ((0, 0), (0, 0), (0, Cp - Cout))).astype(jnp.bfloat16)

    x_spec = pl.BlockSpec((None, L, K3), lambda n, t: (n, 0, 0))    # resident across t
    w_spec = pl.BlockSpec((3, K3, Cp), lambda n, t: (0, 0, 0))
    params = pltpu.CompilerParams(dimension_semantics=("parallel", "arbitrary"))

    # ---- pass 1: per-(image, tile) channel sum / sum-of-squares ----
    stats = pl.pallas_call(
        functools.partial(_stats_kernel, th_rows=TH, w_cols=W),
        grid=(N, T),
        in_specs=[x_spec, w_spec],
        out_specs=pl.BlockSpec((None, 2, Cp), lambda n, t: (n * T + t, 0, 0)),
        out_shape=jax.ShapeDtypeStruct((N * T, 2, Cp), jnp.float32),
        compiler_params=params,
    )(xk, w2)

    # tiny global reduction + BN fold, done once in XLA (all f32)
    m = float(N * H * W)
    tot = jnp.sum(stats, axis=0)                          # (2, Cp)
    mean = tot[0] / m
    var = tot[1] / m - mean * mean                        # E[x^2]-E[x]^2 (see TODO)
    gamma_p = jnp.pad(gamma.astype(jnp.float32), (0, Cp - Cout))
    beta_p = jnp.pad(beta.astype(jnp.float32), (0, Cp - Cout))
    scale = (gamma_p * lax.rsqrt(var + BN_EPS)).reshape(1, Cp)
    shift = (beta_p - mean * scale[0]).reshape(1, Cp)

    # ---- pass 2: recompute conv, apply folded BN + ReLU, bf16 writeback ----
    out_rows = pl.pallas_call(
        functools.partial(_apply_kernel, th_rows=TH, w_cols=W),
        grid=(N, T),
        in_specs=[x_spec, w_spec,
                  pl.BlockSpec((1, Cp), lambda n, t: (0, 0)),
                  pl.BlockSpec((1, Cp), lambda n, t: (0, 0))],
        out_specs=pl.BlockSpec((None, n_rows, Cp), lambda n, t: (n, t, 0)),
        out_shape=jax.ShapeDtypeStruct((N, H * W, Cp), jnp.bfloat16),
        compiler_params=params,
    )(xk, w2, scale, shift)

    # ---- glue: drop channel padding, back to NCHW f32 (module output layout) ----
    out = out_rows.reshape(N, H, W, Cp)[..., :Cout].astype(jnp.float32)
    return jnp.transpose(out, (0, 3, 1, 2))


def _reference(x_nchw, w, b, gamma, beta):
    """Pure-JAX f32 reference reproducing the PyTorch forward (training-mode BN)."""
    y = jax.lax.conv_general_dilated(
        x_nchw.astype(jnp.float32), w.astype(jnp.float32),
        window_strides=(1, 1), padding=((1, 1), (1, 1)),
        dimension_numbers=("NCHW", "OIHW", "NCHW"),
    ) + b.reshape(1, -1, 1, 1)
    mean = jnp.mean(y, axis=(0, 2, 3), keepdims=True)
    var = jnp.mean(jnp.square(y - mean), axis=(0, 2, 3), keepdims=True)
    y = (y - mean) * jax.lax.rsqrt(var + BN_EPS)
    y = y * gamma.reshape(1, -1, 1, 1) + beta.reshape(1, -1, 1, 1)
    return jnp.maximum(y, 0.0)


if __name__ == "__main__":
    # ConvBNRelu(in_=4, out=8) on a (2, 4, 16, 16) input.
    N, Cin, Cout, H, W = 2, 4, 8, 16, 16

    key = jax.random.PRNGKey(0)
    kx, kw, kb = jax.random.split(key, 3)
    x = jax.random.normal(kx, (N, Cin, H, W), dtype=jnp.float32)
    w = jax.random.normal(kw, (Cout, Cin, 3, 3), dtype=jnp.float32) * 0.1
    b = jax.random.normal(kb, (Cout,), dtype=jnp.float32) * 0.1
    gamma = jnp.ones((Cout,), dtype=jnp.float32)   # BatchNorm2d default init
    beta = jnp.zeros((Cout,), dtype=jnp.float32)

    # max_acc_rows=128 forces 2 row-tiles per image so the halo-tiled grid path
    # (grid = (N, H//TH)) is exercised; the default budget is larger.
    out = jax.block_until_ready(conv_bn_relu(x, w, b, gamma, beta, max_acc_rows=128))
    ref = jax.block_until_ready(_reference(x, w, b, gamma, beta))

    assert out.shape == (N, Cout, H, W), out.shape
    # Tolerance is loosened vs. a pure-f32 kernel: matmul inputs and the HBM
    # writeback are bf16 (MXU-native / half the bytes); BN stats/affine are f32.
    assert jnp.allclose(out, ref, atol=3e-2, rtol=3e-2), float(jnp.abs(out - ref).max())

    print("KERNEL_OK")
</pallas_src>

<mosaic_0001>
module attributes {stable_mosaic.version = 11 : i64} {
  func.func @_stats_kernel(%arg0: i32, %arg1: i32, %arg2: memref<1x288x12xbf16, #tpu.memory_space<vmem>>, %arg3: memref<3x12x128xbf16, #tpu.memory_space<vmem>>, %arg4: memref<1x2x128xf32, #tpu.memory_space<vmem>>) attributes {dimension_semantics = [#tpu.dimension_semantics<parallel>, #tpu.dimension_semantics<arbitrary>], iteration_bounds = array<i64: 2, 2>, scalar_prefetch = 0 : i64, scratch_operands = 0 : i64, tpu.core_type = #tpu.core_type<tc>, window_params = [{transform_indices = @transform_0, window_bounds = array<i64: 1, 288, 12>}, {pipeline_mode = #tpu.pipeline_mode<synchronous>, transform_indices = @transform_1, window_bounds = array<i64: 3, 12, 128>}, {transform_indices = @transform_2, window_bounds = array<i64: 1, 2, 128>}]} {
    %c128_i32 = arith.constant 128 : i32
    %0 = arith.muli %arg1, %c128_i32 : i32
    %c0_i32 = arith.constant 0 : i32
    %1 = arith.addi %0, %c0_i32 : i32
    %2 = tpu.assume_multiple %1, 16 : i32
    %c0 = arith.constant 0 : index
    %3 = arith.index_cast %2 : i32 to index
    %c0_0 = arith.constant 0 : index
    %4 = vector.load %arg2[%c0, %3, %c0_0] : memref<1x288x12xbf16, #tpu.memory_space<vmem>>, vector<1x128x12xbf16>
    %5 = vector.shape_cast %4 : vector<1x128x12xbf16> to vector<128x12xbf16>
    %c0_1 = arith.constant 0 : index
    %c0_2 = arith.constant 0 : index
    %c0_3 = arith.constant 0 : index
    %6 = vector.load %arg3[%c0_1, %c0_2, %c0_3] : memref<3x12x128xbf16, #tpu.memory_space<vmem>>, vector<1x12x128xbf16>
    %7 = vector.shape_cast %6 : vector<1x12x128xbf16> to vector<12x128xbf16>
    %cst = arith.constant dense<0.000000e+00> : vector<128x128xf32>
    %8 = tpu.matmul %5, %7, %cst {dimension_numbers = #tpu.dot_dimension_numbers<[1], [0], [0], [1], [0, 0, 1, 1], [], []>} : vector<128x12xbf16>, vector<12x128xbf16>, vector<128x128xf32> -> vector<128x128xf32>
    %c16_i32 = arith.constant 16 : i32
    %9 = arith.addi %0, %c16_i32 : i32
    %10 = tpu.assume_multiple %9, 16 : i32
    %c0_4 = arith.constant 0 : index
    %11 = arith.index_cast %10 : i32 to index
    %c0_5 = arith.constant 0 : index
    %12 = vector.load %arg2[%c0_4, %11, %c0_5] : memref<1x288x12xbf16, #tpu.memory_space<vmem>>, vector<1x128x12xbf16>
    %13 = vector.shape_cast %12 : vector<1x128x12xbf16> to vector<128x12xbf16>
    %c1 = arith.constant 1 : index
    %c0_6 = arith.constant 0 : index
    %c0_7 = arith.constant 0 : index
    %14 = vector.load %arg3[%c1, %c0_6, %c0_7] : memref<3x12x128xbf16, #tpu.memory_space<vmem>>, vector<1x12x128xbf16>
    %15 = vector.shape_cast %14 : vector<1x12x128xbf16> to vector<12x128xbf16>
    %cst_8 = arith.constant dense<0.000000e+00> : vector<128x128xf32>
    %16 = tpu.matmul %13, %15, %cst_8 {dimension_numbers = #tpu.dot_dimension_numbers<[1], [0], [0], [1], [0, 0, 1, 1], [], []>} : vector<128x12xbf16>, vector<12x128xbf16>, vector<128x128xf32> -> vector<128x128xf32>
    %17 = arith.addf %8, %16 : vector<128x128xf32>
    %c32_i32 = arith.constant 32 : i32
    %18 = arith.addi %0, %c32_i32 : i32
    %19 = tpu.assume_multiple %18, 16 : i32
    %c0_9 = arith.constant 0 : index
    %20 = arith.index_cast %19 : i32 to index
    %c0_10 = arith.constant 0 : index
    %21 = vector.load %arg2[%c0_9, %20, %c0_10] : memref<1x288x12xbf16, #tpu.memory_space<vmem>>, vector<1x128x12xbf16>
    %22 = vector.shape_cast %21 : vector<1x128x12xbf16> to vector<128x12xbf16>
    %c2 = arith.constant 2 : index
    %c0_11 = arith.constant 0 : index
    %c0_12 = arith.constant 0 : index
    %23 = vector.load %arg3[%c2, %c0_11, %c0_12] : memref<3x12x128xbf16, #tpu.memory_space<vmem>>, vector<1x12x128xbf16>
    %24 = vector.shape_cast %23 : vector<1x12x128xbf16> to vector<12x128xbf16>
    %cst_13 = arith.constant dense<0.000000e+00> : vector<128x128xf32>
    %25 = tpu.matmul %22, %24, %cst_13 {dimension_numbers = #tpu.dot_dimension_numbers<[1], [0], [0], [1], [0, 0, 1, 1], [], []>} : vector<128x12xbf16>, vector<12x128xbf16>, vector<128x128xf32> -> vector<128x128xf32>
    %26 = arith.addf %17, %25 : vector<128x128xf32>
    %cst_14 = arith.constant dense<0.000000e+00> : vector<128xf32>
    %27 = vector.multi_reduction <add>, %26, %cst_14 [0] : vector<128x128xf32> to vector<128xf32>
    %28 = vector.shape_cast %27 : vector<128xf32> to vector<1x128xf32>
    %29 = arith.mulf %26, %26 : vector<128x128xf32>
    %cst_15 = arith.constant dense<0.000000e+00> : vector<128xf32>
    %30 = vector.multi_reduction <add>, %29, %cst_15 [0] : vector<128x128xf32> to vector<128xf32>
    %31 = vector.shape_cast %30 : vector<128xf32> to vector<1x128xf32>
    %32 = tpu.concatenate %28, %31 in 0 : vector<1x128xf32>, vector<1x128xf32> -> vector<2x128xf32>
    %c0_16 = arith.constant 0 : index
    %c0_17 = arith.constant 0 : index
    %c0_18 = arith.constant 0 : index
    %33 = vector.load %arg4[%c0_16, %c0_17, %c0_18] : memref<1x2x128xf32, #tpu.memory_space<vmem>>, vector<1x2x128xf32>
    %34 = vector.shape_cast %33 : vector<1x2x128xf32> to vector<2x128xf32>
    %35 = vector.shape_cast %32 : vector<2x128xf32> to vector<1x2x128xf32>
    tpu.vector_store %arg4[%c0_16, %c0_17, %c0_18], %35 {strides = array<i32>} : memref<1x2x128xf32, #tpu.memory_space<vmem>>, vector<1x2x128xf32>,
    return
  }
  func.func @transform_0(%arg0: i32, %arg1: i32) -> (i32, i32, i32) {
    %c0_i32 = arith.constant 0 : i32
    %c0_i32_0 = arith.constant 0 : i32
    %c0_i32_1 = arith.constant 0 : i32
    return %arg0, %c0_i32, %c0_i32_0 : i32, i32, i32
  }
  func.func @transform_1(%arg0: i32, %arg1: i32) -> (i32, i32, i32) {
    %c0_i32 = arith.constant 0 : i32
    %c0_i32_0 = arith.constant 0 : i32
    %c0_i32_1 = arith.constant 0 : i32
    %c0_i32_2 = arith.constant 0 : i32
    return %c0_i32, %c0_i32_0, %c0_i32_1 : i32, i32, i32
  }
  func.func @transform_2(%arg0: i32, %arg1: i32) -> (i32, i32, i32) {
    %c2_i32 = arith.constant 2 : i32
    %0 = arith.muli %arg0, %c2_i32 : i32
    %1 = arith.addi %0, %arg1 : i32
    %c0_i32 = arith.constant 0 : i32
    %c0_i32_0 = arith.constant 0 : i32
    %c0_i32_1 = arith.constant 0 : i32
    return %1, %c0_i32, %c0_i32_0 : i32, i32, i32
  }
}

module attributes {stable_mosaic.version = 11 : i64} {
  func.func @_apply_kernel(%arg0: i32, %arg1: i32, %arg2: memref<1x288x12xbf16, #tpu.memory_space<vmem>>, %arg3: memref<3x12x128xbf16, #tpu.memory_space<vmem>>, %arg4: memref<1x128xf32, #tpu.memory_space<vmem>>, %arg5: memref<1x128xf32, #tpu.memory_space<vmem>>, %arg6: memref<1x128x128xbf16, #tpu.memory_space<vmem>>) attributes {dimension_semantics = [#tpu.dimension_semantics<parallel>, #tpu.dimension_semantics<arbitrary>], iteration_bounds = array<i64: 2, 2>, scalar_prefetch = 0 : i64, scratch_operands = 0 : i64, tpu.core_type = #tpu.core_type<tc>, window_params = [{transform_indices = @transform_0, window_bounds = array<i64: 1, 288, 12>}, {pipeline_mode = #tpu.pipeline_mode<synchronous>, transform_indices = @transform_1, window_bounds = array<i64: 3, 12, 128>}, {pipeline_mode = #tpu.pipeline_mode<synchronous>, transform_indices = @transform_2, window_bounds = array<i64: 1, 128>}, {pipeline_mode = #tpu.pipeline_mode<synchronous>, transform_indices = @transform_3, window_bounds = array<i64: 1, 128>}, {transform_indices = @transform_4, window_bounds = array<i64: 1, 128, 128>}]} {
    %c128_i32 = arith.constant 128 : i32
    %0 = arith.muli %arg1, %c128_i32 : i32
    %c0_i32 = arith.constant 0 : i32
    %1 = arith.addi %0, %c0_i32 : i32
    %2 = tpu.assume_multiple %1, 16 : i32
    %c0 = arith.constant 0 : index
    %3 = arith.index_cast %2 : i32 to index
    %c0_0 = arith.constant 0 : index
    %4 = vector.load %arg2[%c0, %3, %c0_0] : memref<1x288x12xbf16, #tpu.memory_space<vmem>>, vector<1x128x12xbf16>
    %5 = vector.shape_cast %4 : vector<1x128x12xbf16> to vector<128x12xbf16>
    %c0_1 = arith.constant 0 : index
    %c0_2 = arith.constant 0 : index
    %c0_3 = arith.constant 0 : index
    %6 = vector.load %arg3[%c0_1, %c0_2, %c0_3] : memref<3x12x128xbf16, #tpu.memory_space<vmem>>, vector<1x12x128xbf16>
    %7 = vector.shape_cast %6 : vector<1x12x128xbf16> to vector<12x128xbf16>
    %cst = arith.constant dense<0.000000e+00> : vector<128x128xf32>
    %8 = tpu.matmul %5, %7, %cst {dimension_numbers = #tpu.dot_dimension_numbers<[1], [0], [0], [1], [0, 0, 1, 1], [], []>} : vector<128x12xbf16>, vector<12x128xbf16>, vector<128x128xf32> -> vector<128x128xf32>
    %c16_i32 = arith.constant 16 : i32
    %9 = arith.addi %0, %c16_i32 : i32
    %10 = tpu.assume_multiple %9, 16 : i32
    %c0_4 = arith.constant 0 : index
    %11 = arith.index_cast %10 : i32 to index
    %c0_5 = arith.constant 0 : index
    %12 = vector.load %arg2[%c0_4, %11, %c0_5] : memref<1x288x12xbf16, #tpu.memory_space<vmem>>, vector<1x128x12xbf16>
    %13 = vector.shape_cast %12 : vector<1x128x12xbf16> to vector<128x12xbf16>
    %c1 = arith.constant 1 : index
    %c0_6 = arith.constant 0 : index
    %c0_7 = arith.constant 0 : index
    %14 = vector.load %arg3[%c1, %c0_6, %c0_7] : memref<3x12x128xbf16, #tpu.memory_space<vmem>>, vector<1x12x128xbf16>
    %15 = vector.shape_cast %14 : vector<1x12x128xbf16> to vector<12x128xbf16>
    %cst_8 = arith.constant dense<0.000000e+00> : vector<128x128xf32>
    %16 = tpu.matmul %13, %15, %cst_8 {dimension_numbers = #tpu.dot_dimension_numbers<[1], [0], [0], [1], [0, 0, 1, 1], [], []>} : vector<128x12xbf16>, vector<12x128xbf16>, vector<128x128xf32> -> vector<128x128xf32>
    %17 = arith.addf %8, %16 : vector<128x128xf32>
    %c32_i32 = arith.constant 32 : i32
    %18 = arith.addi %0, %c32_i32 : i32
    %19 = tpu.assume_multiple %18, 16 : i32
    %c0_9 = arith.constant 0 : index
    %20 = arith.index_cast %19 : i32 to index
    %c0_10 = arith.constant 0 : index
    %21 = vector.load %arg2[%c0_9, %20, %c0_10] : memref<1x288x12xbf16, #tpu.memory_space<vmem>>, vector<1x128x12xbf16>
    %22 = vector.shape_cast %21 : vector<1x128x12xbf16> to vector<128x12xbf16>
    %c2 = arith.constant 2 : index
    %c0_11 = arith.constant 0 : index
    %c0_12 = arith.constant 0 : index
    %23 = vector.load %arg3[%c2, %c0_11, %c0_12] : memref<3x12x128xbf16, #tpu.memory_space<vmem>>, vector<1x12x128xbf16>
    %24 = vector.shape_cast %23 : vector<1x12x128xbf16> to vector<12x128xbf16>
    %cst_13 = arith.constant dense<0.000000e+00> : vector<128x128xf32>
    %25 = tpu.matmul %22, %24, %cst_13 {dimension_numbers = #tpu.dot_dimension_numbers<[1], [0], [0], [1], [0, 0, 1, 1], [], []>} : vector<128x12xbf16>, vector<12x128xbf16>, vector<128x128xf32> -> vector<128x128xf32>
    %26 = arith.addf %17, %25 : vector<128x128xf32>
    %c0_14 = arith.constant 0 : index
    %c0_15 = arith.constant 0 : index
    %27 = vector.load %arg4[%c0_14, %c0_15] : memref<1x128xf32, #tpu.memory_space<vmem>>, vector<1x128xf32>
    %28 = vector.broadcast %27 : vector<1x128xf32> to vector<128x128xf32>
    %29 = arith.mulf %26, %28 : vector<128x128xf32>
    %c0_16 = arith.constant 0 : index
    %c0_17 = arith.constant 0 : index
    %30 = vector.load %arg5[%c0_16, %c0_17] : memref<1x128xf32, #tpu.memory_space<vmem>>, vector<1x128xf32>
    %31 = vector.broadcast %30 : vector<1x128xf32> to vector<128x128xf32>
    %32 = arith.addf %29, %31 : vector<128x128xf32>
    %cst_18 = arith.constant 0.000000e+00 : f32
    %33 = vector.broadcast %cst_18 : f32 to vector<128x128xf32>
    %34 = arith.maximumf %32, %33 : vector<128x128xf32>
    %35 = arith.truncf %34 : vector<128x128xf32> to vector<128x128xbf16>
    %c0_19 = arith.constant 0 : index
    %c0_20 = arith.constant 0 : index
    %c0_21 = arith.constant 0 : index
    %36 = vector.load %arg6[%c0_19, %c0_20, %c0_21] : memref<1x128x128xbf16, #tpu.memory_space<vmem>>, vector<1x128x128xbf16>
    %37 = vector.shape_cast %36 : vector<1x128x128xbf16> to vector<128x128xbf16>
    %38 = vector.shape_cast %35 : vector<128x128xbf16> to vector<1x128x128xbf16>
    tpu.vector_store %arg6[%c0_19, %c0_20, %c0_21], %38 {strides = array<i32>} : memref<1x128x128xbf16, #tpu.memory_space<vmem>>, vector<1x128x128xbf16>,
    return
  }
  func.func @transform_0(%arg0: i32, %arg1: i32) -> (i32, i32, i32) {
    %c0_i32 = arith.constant 0 : i32
    %c0_i32_0 = arith.constant 0 : i32
    %c0_i32_1 = arith.constant 0 : i32
    return %arg0, %c0_i32, %c0_i32_0 : i32, i32, i32
  }
  func.func @transform_1(%arg0: i32, %arg1: i32) -> (i32, i32, i32) {
    %c0_i32 = arith.constant 0 : i32
    %c0_i32_0 = arith.constant 0 : i32
    %c0_i32_1 = arith.constant 0 : i32
    %c0_i32_2 = arith.constant 0 : i32
    return %c0_i32, %c0_i32_0, %c0_i32_1 : i32, i32, i32
  }
  func.func @transform_2(%arg0: i32, %arg1: i32) -> (i32, i32) {
    %c0_i32 = arith.constant 0 : i32
    %c0_i32_0 = arith.constant 0 : i32
    %c0_i32_1 = arith.constant 0 : i32
    return %c0_i32, %c0_i32_0 : i32, i32
  }
  func.func @transform_3(%arg0: i32, %arg1: i32) -> (i32, i32) {
    %c0_i32 = arith.constant 0 : i32
    %c0_i32_0 = arith.constant 0 : i32
    %c0_i32_1 = arith.constant 0 : i32
    return %c0_i32, %c0_i32_0 : i32, i32
  }
  func.func @transform_4(%arg0: i32, %arg1: i32) -> (i32, i32, i32) {
    %c0_i32 = arith.constant 0 : i32
    %c0_i32_0 = arith.constant 0 : i32
    return %arg0, %arg1, %c0_i32 : i32, i32, i32
  }
}

</mosaic_0001>

<llo_original>
// kernel: conv_bn_relu.2
$region0: #{conv_bn_relu.2}
  #allocation0 [shape = 'u32[]', space=smem, size = 0x4, offset = 0x4, fixed_abs, tag = 'smem constant byte address 0x4 - core index']
  #allocation1 [shape = 'u32[144,128]{1,0:T(1,128)}', space=vmem, size = 0x12000, scoped, tag = 'internal scratch']
  %s0 = inlined_call_operand.vmem [shape: bf16[2,288,12], index: 0, kind: input, shape index: {}]
  %s1 = inlined_call_operand.vmem [shape: bf16[3,12,128], index: 1, kind: input, shape index: {}]
  %s2 = inlined_call_operand.vmem [shape: f32[4,2,128], index: 2, kind: output, shape index: {}]
  %s3 = sld [smem:[#allocation0]]
  $region41: #{conv_bn_relu.2} parent=0
    _
  %s5 = ssub.s32 1, %s3
  %s6 = scalar_select 0, %s5, %s3
  loop: start=0, step=1, limit=6
  $region2: #{conv_bn_relu.2} parent=0 // loop_pre_header
    _
  $region3: #{conv_bn_relu.2} parent=0 // loop_header
    %s8 = sphi 0, %s12
    %p9 = scmp.ge.s32.totalorder %s8, 6
    %s15 = sphi 0, %s27
    %s16 = sphi 0, %s23
    %s17 = sphi 0, %s15
    %s18 = sphi 0, %s16
    %s19 = sphi 0, %s17
    %s20 = sphi 0, %s18
    %s30 = sphi 0, %s32
    %s33 = sphi 0, %s30
    %s34 = sphi 0, %s33
    %s50 = sphi 0, %s34
    %s54 = sphi 0, %s54
    %s56 = sphi 0, %s54
    %s57 = sphi 0, %s56
    %s71 = sphi 0, %s57
    %s81 = sphi 0, %s83
    %s84 = sphi 0, %s81
    %s85 = sphi 0, %s84
    %s101 = sphi 0, %s85
  $region4: #{conv_bn_relu.2} parent=0 // loop_header_branch
    %11 = sbr.rel (%p9) target = $region8
  $region5: #{conv_bn_relu.2} parent=0 // loop_body
    %s13 = ssub.s32 %s8, 1
    %s14 = ssub.s32 %s8, 2
    %s21 = sadd.s32 1, %s16
    %p22 = scmp.ge.s32.totalorder %s21, 2
    %s23 = scalar_select %p22, 0, %s21
    %s24 = sadd.s32 1, %s15
    %s25 = scalar_select %p22, %s24, %s15
    %p26 = scmp.ge.s32.totalorder %s25, 2
    %s27 = scalar_select %p26, 0, %s25
    %s28 = ssub.s32 %s15, %s27
    %p29 = scmp.eq.s32.totalorder %s28, 0
    %s31 = sadd.s32 %s30, 1
    %s32 = scalar_select %p29, %s30, %s31
    %p35 = pneg %p29
    %p36 = scmp.eq.s32.totalorder %s8, 3
    %p37 = por %p35, %p36
    %p38 = scmp.ne.s32.totalorder %s30, %s33
    %p39 = scmp.eq.s32.totalorder %s8, 0
    %p40 = por %p38, %p39
    %p41 = scmp.ne.s32.totalorder %s30, %s33
    %p42 = scmp.eq.s32.totalorder %s13, 3
    %p43 = por %p41, %p42
    %p44 = scmp.ne.s32.totalorder %s33, %s34
    %p45 = scmp.eq.s32.totalorder %s13, 0
    %p46 = por %p44, %p45
    %p47 = scmp.ne.s32.totalorder %s33, %s34
    %p48 = scmp.eq.s32.totalorder %s14, 3
    %p49 = por %p47, %p48
    %p51 = scmp.ne.s32.totalorder %s34, %s50
    %p52 = scmp.eq.s32.totalorder %s14, 0
    %p53 = por %p51, %p52
    %s55 = sadd.s32 %s54, 1
    %p58 = scmp.eq.s32.totalorder %s8, 3
    %p59 = scmp.ne.s32.totalorder %s54, %s56
    %p60 = scmp.eq.s32.totalorder %s8, 0
    %p61 = por %p59, %p60
    %p62 = scmp.ne.s32.totalorder %s54, %s56
    %p63 = scmp.eq.s32.totalorder %s13, 3
    %p64 = por %p62, %p63
    %p65 = scmp.ne.s32.totalorder %s56, %s57
    %p66 = scmp.eq.s32.totalorder %s13, 0
    %p67 = por %p65, %p66
    %p68 = scmp.ne.s32.totalorder %s56, %s57
    %p69 = scmp.eq.s32.totalorder %s14, 3
    %p70 = por %p68, %p69
    %p72 = scmp.ne.s32.totalorder %s57, %s71
    %p73 = scmp.eq.s32.totalorder %s14, 0
    %p74 = por %p72, %p73
    %s75 = smul.u32 %s15, 2
    %s76 = sadd.s32 %s75, %s16
    %s77 = smul.u32 %s27, 2
    %s78 = sadd.s32 %s77, %s23
    %s79 = ssub.s32 %s76, %s78
    %p80 = scmp.eq.s32.totalorder %s79, 0
    %s82 = sadd.s32 %s81, 1
    %s83 = scalar_select %p80, %s81, %s82
    %p86 = pneg %p80
    %p87 = scmp.eq.s32.totalorder %s8, 3
    %p88 = por %p86, %p87
    %p89 = scmp.ne.s32.totalorder %s81, %s84
    %p90 = scmp.eq.s32.totalorder %s8, 0
    %p91 = por %p89, %p90
    %p92 = scmp.ne.s32.totalorder %s81, %s84
    %p93 = scmp.eq.s32.totalorder %s13, 3
    %p94 = por %p92, %p93
    %p95 = scmp.ne.s32.totalorder %s84, %s85
    %p96 = scmp.eq.s32.totalorder %s13, 0
    %p97 = por %p95, %p96
    %p98 = scmp.ne.s32.totalorder %s84, %s85
    %p99 = scmp.eq.s32.totalorder %s14, 3
    %p100 = por %p98, %p99
    %p102 = scmp.ne.s32.totalorder %s85, %s101
    %p103 = scmp.eq.s32.totalorder %s14, 0
    %p104 = por %p102, %p103
    %p105 = scmp.le.s32.totalorder 1, %s8
    %p106 = scmp.lt.s32.totalorder %s8, 5
    %p107 = pnand %p105, %p106
    %p108 = pneg %p107
    // Predicated region
    $region9: #{conv_bn_relu.2} parent=5 // pred_check
      _
    $region10: #{conv_bn_relu.2} parent=5 // pred_check_branch
      %110 = sbr.rel (%p107) target = $region12
    $region11: #{conv_bn_relu.2} parent=5 // pred_region
      %s111 = ssub.s32 %s8, 1
      // Predicated region
      $region13: #{conv_bn_relu.2} parent=11 // pred_check
        %p112 = pneg %p67
      $region14: #{conv_bn_relu.2} parent=11 // pred_check_branch
        %114 = sbr.rel (%p112) target = $region16
      $region15: #{conv_bn_relu.2} parent=11 // pred_region
        _
      $region16: #{conv_bn_relu.2} parent=11 // pred_fallthru
        _
    $region12: #{conv_bn_relu.2} parent=5 // pred_fallthru
      _
    %p115 = scmp.lt.s32.totalorder %s8, 4
    // Predicated region
    $region17: #{conv_bn_relu.2} parent=5 // pred_check
      %p116 = pneg %p115
    $region18: #{conv_bn_relu.2} parent=5 // pred_check_branch
      %118 = sbr.rel (%p116) target = $region20
    $region19: #{conv_bn_relu.2} parent=5 // pred_region
      // Predicated region
      $region21: #{conv_bn_relu.2} parent=19 // pred_check
        %p119 = pneg %p40
      $region22: #{conv_bn_relu.2} parent=19 // pred_check_branch
        %121 = sbr.rel (%p119) target = $region24
      $region23: #{conv_bn_relu.2} parent=19 // pred_region
        %p122 = scmp.lt.s32.totalorder %s15, 1
        %s123 = scalar_select %p122, %s15, 1
        %s124 = smul.addr %s123, 36
        %s125 = smul.addr %s124, 4
        %s126 = scalar_lea.vmem %s0, %s125
      $region24: #{conv_bn_relu.2} parent=19 // pred_fallthru
        _
    $region20: #{conv_bn_relu.2} parent=5 // pred_fallthru
      _
    %p127 = scmp.le.s32.totalorder 1, %s8
    %p128 = scmp.lt.s32.totalorder %s8, 5
    %p129 = pnand %p127, %p128
    %p130 = pneg %p129
    // Predicated region
    $region25: #{conv_bn_relu.2} parent=5 // pred_check
      _
    $region26: #{conv_bn_relu.2} parent=5 // pred_check_branch
      %132 = sbr.rel (%p129) target = $region28
    $region27: #{conv_bn_relu.2} parent=5 // pred_region
      %s133 = ssub.s32 %s8, 1
      %p134 = scmp.lt.s32.totalorder %s17, 1
      %s135 = scalar_select %p134, %s17, 1
      %s136 = smul.addr %s135, 36
      %s137 = smul.addr %s136, 4
      %s138 = scalar_lea.vmem %s0, %s137
      %p139 = pneg %p46
      %p140 = pneg %p43
      %p141 = pneg %p67
      %p142 = pneg %p64
      %p143 = pneg %p97
      %p144 = pneg %p94
      %s145 = smul.u32 %s17, 2
      %s146 = sadd.s32 %s145, %s18
      %p147 = scmp.lt.s32.totalorder %s146, 3
      %s148 = scalar_select %p147, %s146, 3
      %s149 = smul.addr %s148, 2
      %s150 = scalar_lea.vmem %s2, %s149
      %p151 = scmp.lt.s32.totalorder %s17, 1
      %s152 = scalar_select %p151, %s17, 1
      %s153 = smul.addr %s152, 36
      %s154 = smul.addr %s153, 4
      %s155 = scalar_lea.vmem %s0, %s154
      %s156 = smul.u32 %s17, 2
      %s157 = sadd.s32 %s156, %s18
      %p158 = scmp.lt.s32.totalorder %s157, 3
      %s159 = scalar_select %p158, %s157, 3
      %s160 = smul.addr %s159, 2
      %s161 = scalar_lea.vmem %s2, %s160
      %s162 = smul.u32 %s17, 2
      %s163 = sadd.s32 %s162, %s18
      %s165 = smul.u32 %s18, 128
      %s166 = sshra.s32 %s165, 3
      %s167 = sand.u32 %s165, 7
      %s168 = smul.addr %s166, 4
      %s169 = scalar_lea.vmem %s155, %s168
      %v170 = vld [vmem:[%s169] sm:$0xf]
      %v171 = vld [vmem:[%s169 + $0x4] sm:$0xf]
      %v172 = vld [vmem:[%s169 + $0x8] sm:$0xf]
      %v173 = vld [vmem:[%s169 + $0xc] sm:$0xf]
      %v174 = vld [vmem:[%s169 + $0x10] sm:$0xf]
      %v175 = vld [vmem:[%s169 + $0x14] sm:$0xf]
      %v176 = vld [vmem:[%s169 + $0x18] sm:$0xf]
      %v177 = vld [vmem:[%s169 + $0x1c] sm:$0xf]
      %v178 = vld [vmem:[%s169 + $0x20] sm:$0xf]
      %v179 = vld [vmem:[%s169 + $0x24] sm:$0xf]
      %v180 = vld [vmem:[%s169 + $0x28] sm:$0xf]
      %v181 = vld [vmem:[%s169 + $0x2c] sm:$0xf]
      %v182 = vld [vmem:[%s169 + $0x30] sm:$0xf]
      %v183 = vld [vmem:[%s169 + $0x34] sm:$0xf]
      %v184 = vld [vmem:[%s169 + $0x38] sm:$0xf]
      %v185 = vld [vmem:[%s169 + $0x3c] sm:$0xf]
      %v186 = vld [vmem:[%s1] sm:$0xf]
      %v187 = vld [vmem:[%s1 + $0x4] sm:$0x3]
      %s188 = sadd.s32 %s165, 16
      %s189 = sshra.s32 %s188, 3
      %s190 = sand.u32 %s188, 7
      %s191 = smul.addr %s189, 4
      %s192 = scalar_lea.vmem %s155, %s191
      %v193 = vld [vmem:[%s192] sm:$0xf]
      %v194 = vld [vmem:[%s192 + $0x4] sm:$0xf]
      %v195 = vld [vmem:[%s192 + $0x8] sm:$0xf]
      %v196 = vld [vmem:[%s192 + $0xc] sm:$0xf]
      %v197 = vld [vmem:[%s192 + $0x10] sm:$0xf]
      %v198 = vld [vmem:[%s192 + $0x14] sm:$0xf]
      %v199 = vld [vmem:[%s192 + $0x18] sm:$0xf]
      %v200 = vld [vmem:[%s192 + $0x1c] sm:$0xf]
      %v201 = vld [vmem:[%s192 + $0x20] sm:$0xf]
      %v202 = vld [vmem:[%s192 + $0x24] sm:$0xf]
      %v203 = vld [vmem:[%s192 + $0x28] sm:$0xf]
      %v204 = vld [vmem:[%s192 + $0x2c] sm:$0xf]
      %v205 = vld [vmem:[%s192 + $0x30] sm:$0xf]
      %v206 = vld [vmem:[%s192 + $0x34] sm:$0xf]
      %v207 = vld [vmem:[%s192 + $0x38] sm:$0xf]
      %v208 = vld [vmem:[%s192 + $0x3c] sm:$0xf]
      %s209 = scalar_lea.vmem %s1, 8
      %v210 = vld [vmem:[%s209] sm:$0xf]
      %v211 = vld [vmem:[%s209 + $0x4] sm:$0x3]
      %v228 = vunpack.c.l.b16 %v193
      %v229 = vunpack.c.l.b16 %v194
      %v230 = vunpack.c.l.b16 %v195
      %v231 = vunpack.c.l.b16 %v196
      %v232 = vunpack.c.l.b16 %v197
      %v233 = vunpack.c.l.b16 %v198
      %v234 = vunpack.c.l.b16 %v199
      %v235 = vunpack.c.l.b16 %v200
      %v236 = vunpack.c.l.b16 %v201
      %v237 = vunpack.c.l.b16 %v202
      %v238 = vunpack.c.l.b16 %v203
      %v239 = vunpack.c.l.b16 %v204
      %v240 = vunpack.c.l.b16 %v205
      %v241 = vunpack.c.l.b16 %v206
      %v242 = vunpack.c.l.b16 %v207
      %v243 = vunpack.c.l.b16 %v208
      %v244 = vpack.c.b16 %v229, %v228
      %v245 = vpack.c.b16 %v231, %v230
      %v246 = vpack.c.b16 %v233, %v232
      %v247 = vpack.c.b16 %v235, %v234
      %v248 = vpack.c.b16 %v237, %v236
      %v249 = vpack.c.b16 %v239, %v238
      %v250 = vpack.c.b16 %v241, %v240
      %v251 = vpack.c.b16 %v243, %v242
      %v254 = vunpack.c.l.b16 %v210
      %v255 = vunpack.c.l.b16 %v211
      %v256 = vpack.c.b16 %v255, %v254
      %vm257 = vcmask 97280
      %v259 = vsel %vm257, %v244, 0
      %v262 = vsel %vm257, %v245, 0
      %v265 = vsel %vm257, %v246, 0
      %v268 = vsel %vm257, %v247, 0
      %v271 = vsel %vm257, %v248, 0
      %v274 = vsel %vm257, %v249, 0
      %v277 = vsel %vm257, %v250, 0
      %v280 = vsel %vm257, %v251, 0
      %vm282 = vcmask 1045504
      %v284 = vsel %vm282, %v256, 0
      %286 = vmatprep.subr.bf16.mxu0 0
      %287 = vmatpush1.bf16.msra.mxu0 %v284
      %288 = vmatprep.subr.bf16.mxu0 0
      %289 = vmatpush1.bf16.msra.mxu0 0
      %290 = vmatprep.subr.bf16.mxu0 0
      %291 = vmatpush1.bf16.msra.mxu0 0
      %292 = vmatprep.subr.bf16.mxu0 0
      %293 = vmatpush1.bf16.msra.mxu0 0
      %294 = vmatprep.subr.bf16.mxu0 0
      %295 = vmatpush1.bf16.msra.mxu0 0
      %296 = vmatprep.subr.bf16.mxu0 0
      %297 = vmatpush1.bf16.msra.mxu0 0
      %298 = vmatprep.subr.bf16.mxu0 0
      %299 = vmatpush1.bf16.msra.mxu0 0
      %300 = vmatprep.subr.bf16.mxu0 0
      %301 = vmatpush1.bf16.msra.mxu0 0
      %302 = vmatprep.subr.bf16.mxu0 0
      %303 = vmatpush1.bf16.msra.mxu0 0
      %304 = vmatprep.subr.bf16.mxu0 0
      %305 = vmatpush1.bf16.msra.mxu0 0
      %306 = vmatprep.subr.bf16.mxu0 0
      %307 = vmatpush1.bf16.msra.mxu0 0
      %308 = vmatprep.subr.bf16.mxu0 0
      %309 = vmatpush1.bf16.msra.mxu0 0
      %310 = vmatprep.subr.bf16.mxu0 0
      %311 = vmatpush1.bf16.msra.mxu0 0
      %312 = vmatprep.subr.bf16.mxu0 0
      %313 = vmatpush1.bf16.msra.mxu0 0
      %314 = vmatprep.subr.bf16.mxu0 0
      %315 = vmatpush1.bf16.msra.mxu0 0
      %316 = vmatprep.subr.bf16.mxu0 0
      %317 = vmatpush1.bf16.msra.mxu0 0
      %318 = vmatprep.mubr.bf16.mxu0 0
      %319 = vmatmul.mubr.bf16.gmra.mrb[0].mxu0 %v259
      %v320 = vpop.f32.mrb[0].mxu0
      %v321 = vadd.f32 0.0, %v320
      %v322 = vpop.f32.mrb[0].mxu0
      %v323 = vpop.f32.mrb[0].mxu0
      %v324 = vadd.f32 0.0, %v323
      %v325 = vpop.f32.mrb[0].mxu0
      %326 = vmatprep.mubr.bf16.mxu0 0
      %327 = vmatmul.mubr.bf16.gmra.mrb[0].mxu0 %v262
      %v328 = vpop.f32.mrb[0].mxu0
      %v329 = vadd.f32 0.0, %v328
      %v330 = vpop.f32.mrb[0].mxu0
      %v331 = vpop.f32.mrb[0].mxu0
      %v332 = vadd.f32 0.0, %v331
      %v333 = vpop.f32.mrb[0].mxu0
      %334 = vmatprep.mubr.bf16.mxu0 0
      %335 = vmatmul.mubr.bf16.gmra.mrb[0].mxu0 %v265
      %v336 = vpop.f32.mrb[0].mxu0
      %v337 = vadd.f32 0.0, %v336
      %v338 = vpop.f32.mrb[0].mxu0
      %v339 = vpop.f32.mrb[0].mxu0
      %v340 = vadd.f32 0.0, %v339
      %v341 = vpop.f32.mrb[0].mxu0
      %342 = vmatprep.mubr.bf16.mxu0 0
      %343 = vmatmul.mubr.bf16.gmra.mrb[0].mxu0 %v268
      %v344 = vpop.f32.mrb[0].mxu0
      %v345 = vadd.f32 0.0, %v344
      %v346 = vpop.f32.mrb[0].mxu0
      %v347 = vpop.f32.mrb[0].mxu0
      %v348 = vadd.f32 0.0, %v347
      %v349 = vpop.f32.mrb[0].mxu0
      %350 = vmatprep.mubr.bf16.mxu0 0
      %351 = vmatmul.mubr.bf16.gmra.mrb[0].mxu0 %v271
      %v352 = vpop.f32.mrb[0].mxu0
      %v353 = vadd.f32 0.0, %v352
      %v354 = vpop.f32.mrb[0].mxu0
      %v355 = vpop.f32.mrb[0].mxu0
      %v356 = vadd.f32 0.0, %v355
      %v357 = vpop.f32.mrb[0].mxu0
      %358 = vmatprep.mubr.bf16.mxu0 0
      %359 = vmatmul.mubr.bf16.gmra.mrb[0].mxu0 %v274
      %v360 = vpop.f32.mrb[0].mxu0
      %v361 = vadd.f32 0.0, %v360
      %v362 = vpop.f32.mrb[0].mxu0
      %v363 = vpop.f32.mrb[0].mxu0
      %v364 = vadd.f32 0.0, %v363
      %v365 = vpop.f32.mrb[0].mxu0
      %366 = vmatprep.mubr.bf16.mxu0 0
      %367 = vmatmul.mubr.bf16.gmra.mrb[0].mxu0 %v277
      %v368 = vpop.f32.mrb[0].mxu0
      %v369 = vadd.f32 0.0, %v368
      %v370 = vpop.f32.mrb[0].mxu0
      %v371 = vpop.f32.mrb[0].mxu0
      %v372 = vadd.f32 0.0, %v371
      %v373 = vpop.f32.mrb[0].mxu0
      %374 = vmatprep.mubr.bf16.mxu0 0
      %375 = vmatmul.mubr.bf16.gmra.mrb[0].mxu0 %v280
      %v376 = vpop.f32.mrb[0].mxu0
      %v377 = vadd.f32 0.0, %v376
      %v378 = vpop.f32.mrb[0].mxu0
      %v379 = vpop.f32.mrb[0].mxu0
      %v380 = vadd.f32 0.0, %v379
      %v381 = vpop.f32.mrb[0].mxu0
      %382 = vdwg.mxu0
      %v399 = vunpack.c.l.b16 %v170
      %v400 = vunpack.c.l.b16 %v171
      %v401 = vunpack.c.l.b16 %v172
      %v402 = vunpack.c.l.b16 %v173
      %v403 = vunpack.c.l.b16 %v174
      %v404 = vunpack.c.l.b16 %v175
      %v405 = vunpack.c.l.b16 %v176
      %v406 = vunpack.c.l.b16 %v177
      %v407 = vunpack.c.l.b16 %v178
      %v408 = vunpack.c.l.b16 %v179
      %v409 = vunpack.c.l.b16 %v180
      %v410 = vunpack.c.l.b16 %v181
      %v411 = vunpack.c.l.b16 %v182
      %v412 = vunpack.c.l.b16 %v183
      %v413 = vunpack.c.l.b16 %v184
      %v414 = vunpack.c.l.b16 %v185
      %v415 = vpack.c.b16 %v400, %v399
      %v416 = vpack.c.b16 %v402, %v401
      %v417 = vpack.c.b16 %v404, %v403
      %v418 = vpack.c.b16 %v406, %v405
      %v419 = vpack.c.b16 %v408, %v407
      %v420 = vpack.c.b16 %v410, %v409
      %v421 = vpack.c.b16 %v412, %v411
      %v422 = vpack.c.b16 %v414, %v413
      %v425 = vunpack.c.l.b16 %v186
      %v426 = vunpack.c.l.b16 %v187
      %v427 = vpack.c.b16 %v426, %v425
      %v429 = vsel %vm257, %v415, 0
      %v432 = vsel %vm257, %v416, 0
      %v435 = vsel %vm257, %v417, 0
      %v438 = vsel %vm257, %v418, 0
      %v441 = vsel %vm257, %v419, 0
      %v444 = vsel %vm257, %v420, 0
      %v447 = vsel %vm257, %v421, 0
      %v450 = vsel %vm257, %v422, 0
      %v453 = vsel %vm282, %v427, 0
      %455 = vmatprep.subr.bf16.mxu0 0
      %456 = vmatpush1.bf16.msra.mxu0 %v453
      %457 = vmatprep.subr.bf16.mxu0 0
      %458 = vmatpush1.bf16.msra.mxu0 0
      %459 = vmatprep.subr.bf16.mxu0 0
      %460 = vmatpush1.bf16.msra.mxu0 0
      %461 = vmatprep.subr.bf16.mxu0 0
      %462 = vmatpush1.bf16.msra.mxu0 0
      %463 = vmatprep.subr.bf16.mxu0 0
      %464 = vmatpush1.bf16.msra.mxu0 0
      %465 = vmatprep.subr.bf16.mxu0 0
      %466 = vmatpush1.bf16.msra.mxu0 0
      %467 = vmatprep.subr.bf16.mxu0 0
      %468 = vmatpush1.bf16.msra.mxu0 0
      %469 = vmatprep.subr.bf16.mxu0 0
      %470 = vmatpush1.bf16.msra.mxu0 0
      %471 = vmatprep.subr.bf16.mxu0 0
      %472 = vmatpush1.bf16.msra.mxu0 0
      %473 = vmatprep.subr.bf16.mxu0 0
      %474 = vmatpush1.bf16.msra.mxu0 0
      %475 = vmatprep.subr.bf16.mxu0 0
      %476 = vmatpush1.bf16.msra.mxu0 0
      %477 = vmatprep.subr.bf16.mxu0 0
      %478 = vmatpush1.bf16.msra.mxu0 0
      %479 = vmatprep.subr.bf16.mxu0 0
      %480 = vmatpush1.bf16.msra.mxu0 0
      %481 = vmatprep.subr.bf16.mxu0 0
      %482 = vmatpush1.bf16.msra.mxu0 0
      %483 = vmatprep.subr.bf16.mxu0 0
      %484 = vmatpush1.bf16.msra.mxu0 0
      %485 = vmatprep.subr.bf16.mxu0 0
      %486 = vmatpush1.bf16.msra.mxu0 0
      %487 = vmatprep.mubr.bf16.mxu0 0
      %488 = vmatmul.mubr.bf16.gmra.mrb[0].mxu0 %v429
      %v489 = vpop.f32.mrb[0].mxu0
      %v490 = vadd.f32 %v321, %v489
      %v491 = vpop.f32.mrb[0].mxu0
      %v492 = vpop.f32.mrb[0].mxu0
      %v493 = vadd.f32 %v324, %v492
      %v494 = vpop.f32.mrb[0].mxu0
      %495 = vmatprep.mubr.bf16.mxu0 0
      %496 = vmatmul.mubr.bf16.gmra.mrb[0].mxu0 %v432
      %v497 = vpop.f32.mrb[0].mxu0
      %v498 = vadd.f32 %v329, %v497
      %v499 = vpop.f32.mrb[0].mxu0
      %v500 = vpop.f32.mrb[0].mxu0
      %v501 = vadd.f32 %v332, %v500
      %v502 = vpop.f32.mrb[0].mxu0
      %503 = vmatprep.mubr.bf16.mxu0 0
      %504 = vmatmul.mubr.bf16.gmra.mrb[0].mxu0 %v435
      %v505 = vpop.f32.mrb[0].mxu0
      %v506 = vadd.f32 %v337, %v505
      %v507 = vpop.f32.mrb[0].mxu0
      %v508 = vpop.f32.mrb[0].mxu0
      %v509 = vadd.f32 %v340, %v508
      %v510 = vpop.f32.mrb[0].mxu0
      %511 = vmatprep.mubr.bf16.mxu0 0
      %512 = vmatmul.mubr.bf16.gmra.mrb[0].mxu0 %v438
      %v513 = vpop.f32.mrb[0].mxu0
      %v514 = vadd.f32 %v345, %v513
      %v515 = vpop.f32.mrb[0].mxu0
      %v516 = vpop.f32.mrb[0].mxu0
      %v517 = vadd.f32 %v348, %v516
      %v518 = vpop.f32.mrb[0].mxu0
      %519 = vmatprep.mubr.bf16.mxu0 0
      %520 = vmatmul.mubr.bf16.gmra.mrb[0].mxu0 %v441
      %v521 = vpop.f32.mrb[0].mxu0
      %v522 = vadd.f32 %v353, %v521
      %v523 = vpop.f32.mrb[0].mxu0
      %v524 = vpop.f32.mrb[0].mxu0
      %v525 = vadd.f32 %v356, %v524
      %v526 = vpop.f32.mrb[0].mxu0
      %527 = vmatprep.mubr.bf16.mxu0 0
      %528 = vmatmul.mubr.bf16.gmra.mrb[0].mxu0 %v444
      %v529 = vpop.f32.mrb[0].mxu0
      %v530 = vadd.f32 %v361, %v529
      %v531 = vpop.f32.mrb[0].mxu0
      %v532 = vpop.f32.mrb[0].mxu0
      %v533 = vadd.f32 %v364, %v532
      %v534 = vpop.f32.mrb[0].mxu0
      %535 = vmatprep.mubr.bf16.mxu0 0
      %536 = vmatmul.mubr.bf16.gmra.mrb[0].mxu0 %v447
      %v537 = vpop.f32.mrb[0].mxu0
      %v538 = vadd.f32 %v369, %v537
      %v539 = vpop.f32.mrb[0].mxu0
      %v540 = vpop.f32.mrb[0].mxu0
      %v541 = vadd.f32 %v372, %v540
      %v542 = vpop.f32.mrb[0].mxu0
      %543 = vmatprep.mubr.bf16.mxu0 0
      %544 = vmatmul.mubr.bf16.gmra.mrb[0].mxu0 %v450
      %v545 = vpop.f32.mrb[0].mxu0
      %v546 = vadd.f32 %v377, %v545
      %v547 = vpop.f32.mrb[0].mxu0
      %v548 = vpop.f32.mrb[0].mxu0
      %v549 = vadd.f32 %v380, %v548
      %v550 = vpop.f32.mrb[0].mxu0
      %551 = vdwg.mxu0
      %s552 = sadd.s32 %s165, 32
      %s553 = sshra.s32 %s552, 3
      %s554 = sand.u32 %s552, 7
      %s555 = smul.addr %s553, 4
      %s556 = scalar_lea.vmem %s155, %s555
      %v557 = vld [vmem:[%s556] sm:$0xf]
      %v558 = vld [vmem:[%s556 + $0x4] sm:$0xf]
      %v559 = vld [vmem:[%s556 + $0x8] sm:$0xf]
      %v560 = vld [vmem:[%s556 + $0xc] sm:$0xf]
      %v561 = vld [vmem:[%s556 + $0x10] sm:$0xf]
      %v562 = vld [vmem:[%s556 + $0x14] sm:$0xf]
      %v563 = vld [vmem:[%s556 + $0x18] sm:$0xf]
      %v564 = vld [vmem:[%s556 + $0x1c] sm:$0xf]
      %v565 = vld [vmem:[%s556 + $0x20] sm:$0xf]
      %v566 = vld [vmem:[%s556 + $0x24] sm:$0xf]
      %v567 = vld [vmem:[%s556 + $0x28] sm:$0xf]
      %v568 = vld [vmem:[%s556 + $0x2c] sm:$0xf]
      %v569 = vld [vmem:[%s556 + $0x30] sm:$0xf]
      %v570 = vld [vmem:[%s556 + $0x34] sm:$0xf]
      %v571 = vld [vmem:[%s556 + $0x38] sm:$0xf]
      %v572 = vld [vmem:[%s556 + $0x3c] sm:$0xf]
      %s573 = scalar_lea.vmem %s1, 16
      %v574 = vld [vmem:[%s573] sm:$0xf]
      %v575 = vld [vmem:[%s573 + $0x4] sm:$0x3]
      %v592 = vunpack.c.l.b16 %v557
      %v593 = vunpack.c.l.b16 %v558
      %v594 = vunpack.c.l.b16 %v559
      %v595 = vunpack.c.l.b16 %v560
      %v596 = vunpack.c.l.b16 %v561
      %v597 = vunpack.c.l.b16 %v562
      %v598 = vunpack.c.l.b16 %v563
      %v599 = vunpack.c.l.b16 %v564
      %v600 = vunpack.c.l.b16 %v565
      %v601 = vunpack.c.l.b16 %v566
      %v602 = vunpack.c.l.b16 %v567
      %v603 = vunpack.c.l.b16 %v568
      %v604 = vunpack.c.l.b16 %v569
      %v605 = vunpack.c.l.b16 %v570
      %v606 = vunpack.c.l.b16 %v571
      %v607 = vunpack.c.l.b16 %v572
      %v608 = vpack.c.b16 %v593, %v592
      %v609 = vpack.c.b16 %v595, %v594
      %v610 = vpack.c.b16 %v597, %v596
      %v611 = vpack.c.b16 %v599, %v598
      %v612 = vpack.c.b16 %v601, %v600
      %v613 = vpack.c.b16 %v603, %v602
      %v614 = vpack.c.b16 %v605, %v604
      %v615 = vpack.c.b16 %v607, %v606
      %v618 = vunpack.c.l.b16 %v574
      %v619 = vunpack.c.l.b16 %v575
      %v620 = vpack.c.b16 %v619, %v618
      %v622 = vsel %vm257, %v608, 0
      %v625 = vsel %vm257, %v609, 0
      %v628 = vsel %vm257, %v610, 0
      %v631 = vsel %vm257, %v611, 0
      %v634 = vsel %vm257, %v612, 0
      %v637 = vsel %vm257, %v613, 0
      %v640 = vsel %vm257, %v614, 0
      %v643 = vsel %vm257, %v615, 0
      %v646 = vsel %vm282, %v620, 0
      %648 = vmatprep.subr.bf16.mxu0 0
      %649 = vmatpush1.bf16.msra.mxu0 %v646
      %650 = vmatprep.subr.bf16.mxu0 0
      %651 = vmatpush1.bf16.msra.mxu0 0
      %652 = vmatprep.subr.bf16.mxu0 0
      %653 = vmatpush1.bf16.msra.mxu0 0
      %654 = vmatprep.subr.bf16.mxu0 0
      %655 = vmatpush1.bf16.msra.mxu0 0
      %656 = vmatprep.subr.bf16.mxu0 0
      %657 = vmatpush1.bf16.msra.mxu0 0
      %658 = vmatprep.subr.bf16.mxu0 0
      %659 = vmatpush1.bf16.msra.mxu0 0
      %660 = vmatprep.subr.bf16.mxu0 0
      %661 = vmatpush1.bf16.msra.mxu0 0
      %662 = vmatprep.subr.bf16.mxu0 0
      %663 = vmatpush1.bf16.msra.mxu0 0
      %664 = vmatprep.subr.bf16.mxu0 0
      %665 = vmatpush1.bf16.msra.mxu0 0
      %666 = vmatprep.subr.bf16.mxu0 0
      %667 = vmatpush1.bf16.msra.mxu0 0
      %668 = vmatprep.subr.bf16.mxu0 0
      %669 = vmatpush1.bf16.msra.mxu0 0
      %670 = vmatprep.subr.bf16.mxu0 0
      %671 = vmatpush1.bf16.msra.mxu0 0
      %672 = vmatprep.subr.bf16.mxu0 0
      %673 = vmatpush1.bf16.msra.mxu0 0
      %674 = vmatprep.subr.bf16.mxu0 0
      %675 = vmatpush1.bf16.msra.mxu0 0
      %676 = vmatprep.subr.bf16.mxu0 0
      %677 = vmatpush1.bf16.msra.mxu0 0
      %678 = vmatprep.subr.bf16.mxu0 0
      %679 = vmatpush1.bf16.msra.mxu0 0
      %680 = vmatprep.mubr.bf16.mxu0 0
      %681 = vmatmul.mubr.bf16.gmra.mrb[0].mxu0 %v622
      %v682 = vpop.f32.mrb[0].mxu0
      %v683 = vadd.f32 0.0, %v682
      %v684 = vpop.f32.mrb[0].mxu0
      %v685 = vpop.f32.mrb[0].mxu0
      %v686 = vadd.f32 0.0, %v685
      %v687 = vpop.f32.mrb[0].mxu0
      %688 = vmatprep.mubr.bf16.mxu0 0
      %689 = vmatmul.mubr.bf16.gmra.mrb[0].mxu0 %v625
      %v690 = vpop.f32.mrb[0].mxu0
      %v691 = vadd.f32 0.0, %v690
      %v692 = vpop.f32.mrb[0].mxu0
      %v693 = vpop.f32.mrb[0].mxu0
      %v694 = vadd.f32 0.0, %v693
      %v695 = vpop.f32.mrb[0].mxu0
      %696 = vmatprep.mubr.bf16.mxu0 0
      %697 = vmatmul.mubr.bf16.gmra.mrb[0].mxu0 %v628
      %v698 = vpop.f32.mrb[0].mxu0
      %v699 = vadd.f32 0.0, %v698
      %v700 = vpop.f32.mrb[0].mxu0
      %v701 = vpop.f32.mrb[0].mxu0
      %v702 = vadd.f32 0.0, %v701
      %v703 = vpop.f32.mrb[0].mxu0
      %704 = vmatprep.mubr.bf16.mxu0 0
      %705 = vmatmul.mubr.bf16.gmra.mrb[0].mxu0 %v631
      %v706 = vpop.f32.mrb[0].mxu0
      %v707 = vadd.f32 0.0, %v706
      %v708 = vpop.f32.mrb[0].mxu0
      %v709 = vpop.f32.mrb[0].mxu0
      %v710 = vadd.f32 0.0, %v709
      %v711 = vpop.f32.mrb[0].mxu0
      %712 = vmatprep.mubr.bf16.mxu0 0
      %713 = vmatmul.mubr.bf16.gmra.mrb[0].mxu0 %v634
      %v714 = vpop.f32.mrb[0].mxu0
      %v715 = vadd.f32 0.0, %v714
      %v716 = vpop.f32.mrb[0].mxu0
      %v717 = vpop.f32.mrb[0].mxu0
      %v718 = vadd.f32 0.0, %v717
      %v719 = vpop.f32.mrb[0].mxu0
      %720 = vmatprep.mubr.bf16.mxu0 0
      %721 = vmatmul.mubr.bf16.gmra.mrb[0].mxu0 %v637
      %v722 = vpop.f32.mrb[0].mxu0
      %v723 = vadd.f32 0.0, %v722
      %v724 = vpop.f32.mrb[0].mxu0
      %v725 = vpop.f32.mrb[0].mxu0
      %v726 = vadd.f32 0.0, %v725
      %v727 = vpop.f32.mrb[0].mxu0
      %728 = vmatprep.mubr.bf16.mxu0 0
      %729 = vmatmul.mubr.bf16.gmra.mrb[0].mxu0 %v640
      %v730 = vpop.f32.mrb[0].mxu0
      %v731 = vadd.f32 0.0, %v730
      %v732 = vpop.f32.mrb[0].mxu0
      %v733 = vpop.f32.mrb[0].mxu0
      %v734 = vadd.f32 0.0, %v733
      %v735 = vpop.f32.mrb[0].mxu0
      %736 = vmatprep.mubr.bf16.mxu0 0
      %737 = vmatmul.mubr.bf16.gmra.mrb[0].mxu0 %v643
      %v738 = vpop.f32.mrb[0].mxu0
      %v739 = vadd.f32 0.0, %v738
      %v740 = vpop.f32.mrb[0].mxu0
      %v741 = vpop.f32.mrb[0].mxu0
      %v742 = vadd.f32 0.0, %v741
      %v743 = vpop.f32.mrb[0].mxu0
      %744 = vdwg.mxu0
      %v745 = vadd.f32 %v490, %v683
      %v746 = vadd.f32 %v493, %v686
      %v747 = vadd.f32 %v498, %v691
      %v748 = vadd.f32 %v501, %v694
      %v749 = vadd.f32 %v506, %v699
      %v750 = vadd.f32 %v509, %v702
      %v751 = vadd.f32 %v514, %v707
      %v752 = vadd.f32 %v517, %v710
      %v753 = vadd.f32 %v522, %v715
      %v754 = vadd.f32 %v525, %v718
      %v755 = vadd.f32 %v530, %v723
      %v756 = vadd.f32 %v533, %v726
      %v757 = vadd.f32 %v538, %v731
      %v758 = vadd.f32 %v541, %v734
      %v759 = vadd.f32 %v546, %v739
      %v760 = vadd.f32 %v549, %v742
      %v761 = vadd.f32 %v745, %v746
      %v762 = vadd.f32 %v761, %v747
      %v763 = vadd.f32 %v762, %v748
      %v764 = vadd.f32 %v763, %v749
      %v765 = vadd.f32 %v764, %v750
      %v766 = vadd.f32 %v765, %v751
      %v767 = vadd.f32 %v766, %v752
      %v768 = vadd.f32 %v767, %v753
      %v769 = vadd.f32 %v768, %v754
      %v770 = vadd.f32 %v769, %v755
      %v771 = vadd.f32 %v770, %v756
      %v772 = vadd.f32 %v771, %v757
      %v773 = vadd.f32 %v772, %v758
      %v774 = vadd.f32 %v773, %v759
      %v775 = vadd.f32 %v774, %v760
      %v776 = vrot.slane %v775, 4
      %v777 = vadd.f32 %v775, %v776
      %v778 = vrot.slane %v777, 2
      %v779 = vadd.f32 %v777, %v778
      %v780 = vrot.slane %v779, 1
      %v781 = vadd.f32 %v779, %v780
      %v782 = vmul.f32 %v745, %v745
      %v783 = vmul.f32 %v746, %v746
      %v784 = vmul.f32 %v747, %v747
      %v785 = vmul.f32 %v748, %v748
      %v786 = vmul.f32 %v749, %v749
      %v787 = vmul.f32 %v750, %v750
      %v788 = vmul.f32 %v751, %v751
      %v789 = vmul.f32 %v752, %v752
      %v790 = vmul.f32 %v753, %v753
      %v791 = vmul.f32 %v754, %v754
      %v792 = vmul.f32 %v755, %v755
      %v793 = vmul.f32 %v756, %v756
      %v794 = vmul.f32 %v757, %v757
      %v795 = vmul.f32 %v758, %v758
      %v796 = vmul.f32 %v759, %v759
      %v797 = vmul.f32 %v760, %v760
      %v798 = vadd.f32 %v782, %v783
      %v799 = vadd.f32 %v798, %v784
      %v800 = vadd.f32 %v799, %v785
      %v801 = vadd.f32 %v800, %v786
      %v802 = vadd.f32 %v801, %v787
      %v803 = vadd.f32 %v802, %v788
      %v804 = vadd.f32 %v803, %v789
      %v805 = vadd.f32 %v804, %v790
      %v806 = vadd.f32 %v805, %v791
      %v807 = vadd.f32 %v806, %v792
      %v808 = vadd.f32 %v807, %v793
      %v809 = vadd.f32 %v808, %v794
      %v810 = vadd.f32 %v809, %v795
      %v811 = vadd.f32 %v810, %v796
      %v812 = vadd.f32 %v811, %v797
      %v813 = vrot.slane %v812, 4
      %v814 = vadd.f32 %v812, %v813
      %v815 = vrot.slane %v814, 2
      %v816 = vadd.f32 %v814, %v815
      %v817 = vrot.slane %v816, 1
      %v818 = vadd.f32 %v816, %v817
      %vm819 = vcmask 1040384
      %v820 = vsel %vm819, %v781, %v818
      %821 = vst [vmem:[%s161] sm:$0x3] %v820
      %s822 = smul.u32 %s17, 2
      %s823 = sadd.s32 %s822, %s18
      %p824 = scmp.lt.s32.totalorder %s823, 3
      %s825 = scalar_select %p824, %s823, 3
      %s826 = smul.addr %s825, 2
      %s827 = scalar_lea.vmem %s2, %s826
      // Predicated region
      $region29: #{conv_bn_relu.2} parent=27 // pred_check
        %p828 = pneg %p94
      $region30: #{conv_bn_relu.2} parent=27 // pred_check_branch
        %830 = sbr.rel (%p828) target = $region32
      $region31: #{conv_bn_relu.2} parent=27 // pred_region
        %s831 = smul.u32 %s17, 2
        %s832 = sadd.s32 %s831, %s18
      $region32: #{conv_bn_relu.2} parent=27 // pred_fallthru
        _
    $region28: #{conv_bn_relu.2} parent=5 // pred_fallthru
      _
    %p833 = scmp.le.s32.totalorder 2, %s8
    // Predicated region
    $region33: #{conv_bn_relu.2} parent=5 // pred_check
      %p834 = pneg %p833
    $region34: #{conv_bn_relu.2} parent=5 // pred_check_branch
      %836 = sbr.rel (%p834) target = $region36
    $region35: #{conv_bn_relu.2} parent=5 // pred_region
      %s837 = ssub.s32 %s8, 2
      // Predicated region
      $region37: #{conv_bn_relu.2} parent=35 // pred_check
        %p838 = pneg %p100
      $region38: #{conv_bn_relu.2} parent=35 // pred_check_branch
        %840 = sbr.rel (%p838) target = $region40
      $region39: #{conv_bn_relu.2} parent=35 // pred_region
        %s841 = smul.u32 %s19, 2
        %s842 = sadd.s32 %s841, %s20
        %p843 = scmp.lt.s32.totalorder %s842, 3
        %s844 = scalar_select %p843, %s842, 3
        %s845 = smul.addr %s844, 2
        %s846 = scalar_lea.vmem %s2, %s845
      $region40: #{conv_bn_relu.2} parent=35 // pred_fallthru
        _
    $region36: #{conv_bn_relu.2} parent=5 // pred_fallthru
      _
  $region6: #{conv_bn_relu.2} parent=0 // loop_footer
    %s12 = sadd.s32 1, %s8
  $region7: #{conv_bn_relu.2} parent=0 // loop_footer_branch
    %7 = sbr.rel target = $region3
  $region8: #{conv_bn_relu.2} parent=0 // loop_exit
    _

// kernel: conv_bn_relu.3
$region0: #{conv_bn_relu.3}
  #allocation0 [shape = 'u32[]', space=smem, size = 0x4, offset = 0x4, fixed_abs, tag = 'smem constant byte address 0x4 - core index']
  #allocation1 [shape = 'u32[144,128]{1,0:T(1,128)}', space=vmem, size = 0x12000, scoped, tag = 'internal scratch']
  %s0 = inlined_call_operand.vmem [shape: bf16[2,288,12], index: 0, kind: input, shape index: {}]
  %s1 = inlined_call_operand.vmem [shape: bf16[3,12,128], index: 1, kind: input, shape index: {}]
  %s2 = inlined_call_operand.vmem [shape: f32[1,128], index: 2, kind: input, shape index: {}]
  %s3 = inlined_call_operand.vmem [shape: f32[1,128], index: 3, kind: input, shape index: {}]
  %s4 = inlined_call_operand.vmem [shape: bf16[2,256,128], index: 4, kind: output, shape index: {}]
  %s5 = sld [smem:[#allocation0]]
  $region49: #{conv_bn_relu.3} parent=0
    _
  %s7 = ssub.s32 1, %s5
  %s8 = scalar_select 0, %s7, %s5
  loop: start=0, step=1, limit=6
  $region2: #{conv_bn_relu.3} parent=0 // loop_pre_header
    _
  $region3: #{conv_bn_relu.3} parent=0 // loop_header
    %s10 = sphi 0, %s14
    %p11 = scmp.ge.s32.totalorder %s10, 6
    %s17 = sphi 0, %s29
    %s18 = sphi 0, %s25
    %s19 = sphi 0, %s17
    %s20 = sphi 0, %s18
    %s21 = sphi 0, %s19
    %s22 = sphi 0, %s20
    %s32 = sphi 0, %s34
    %s35 = sphi 0, %s32
    %s36 = sphi 0, %s35
    %s52 = sphi 0, %s36
    %s56 = sphi 0, %s56
    %s58 = sphi 0, %s56
    %s59 = sphi 0, %s58
    %s73 = sphi 0, %s59
    %s77 = sphi 0, %s77
    %s79 = sphi 0, %s77
    %s80 = sphi 0, %s79
    %s94 = sphi 0, %s80
    %s98 = sphi 0, %s98
    %s100 = sphi 0, %s98
    %s101 = sphi 0, %s100
    %s115 = sphi 0, %s101
    %s123 = sphi 0, %s125
    %s126 = sphi 0, %s123
    %s127 = sphi 0, %s126
    %s143 = sphi 0, %s127
  $region4: #{conv_bn_relu.3} parent=0 // loop_header_branch
    %13 = sbr.rel (%p11) target = $region8
  $region5: #{conv_bn_relu.3} parent=0 // loop_body
    %s15 = ssub.s32 %s10, 1
    %s16 = ssub.s32 %s10, 2
    %s23 = sadd.s32 1, %s18
    %p24 = scmp.ge.s32.totalorder %s23, 2
    %s25 = scalar_select %p24, 0, %s23
    %s26 = sadd.s32 1, %s17
    %s27 = scalar_select %p24, %s26, %s17
    %p28 = scmp.ge.s32.totalorder %s27, 2
    %s29 = scalar_select %p28, 0, %s27
    %s30 = ssub.s32 %s17, %s29
    %p31 = scmp.eq.s32.totalorder %s30, 0
    %s33 = sadd.s32 %s32, 1
    %s34 = scalar_select %p31, %s32, %s33
    %p37 = pneg %p31
    %p38 = scmp.eq.s32.totalorder %s10, 3
    %p39 = por %p37, %p38
    %p40 = scmp.ne.s32.totalorder %s32, %s35
    %p41 = scmp.eq.s32.totalorder %s10, 0
    %p42 = por %p40, %p41
    %p43 = scmp.ne.s32.totalorder %s32, %s35
    %p44 = scmp.eq.s32.totalorder %s15, 3
    %p45 = por %p43, %p44
    %p46 = scmp.ne.s32.totalorder %s35, %s36
    %p47 = scmp.eq.s32.totalorder %s15, 0
    %p48 = por %p46, %p47
    %p49 = scmp.ne.s32.totalorder %s35, %s36
    %p50 = scmp.eq.s32.totalorder %s16, 3
    %p51 = por %p49, %p50
    %p53 = scmp.ne.s32.totalorder %s36, %s52
    %p54 = scmp.eq.s32.totalorder %s16, 0
    %p55 = por %p53, %p54
    %s57 = sadd.s32 %s56, 1
    %p60 = scmp.eq.s32.totalorder %s10, 3
    %p61 = scmp.ne.s32.totalorder %s56, %s58
    %p62 = scmp.eq.s32.totalorder %s10, 0
    %p63 = por %p61, %p62
    %p64 = scmp.ne.s32.totalorder %s56, %s58
    %p65 = scmp.eq.s32.totalorder %s15, 3
    %p66 = por %p64, %p65
    %p67 = scmp.ne.s32.totalorder %s58, %s59
    %p68 = scmp.eq.s32.totalorder %s15, 0
    %p69 = por %p67, %p68
    %p70 = scmp.ne.s32.totalorder %s58, %s59
    %p71 = scmp.eq.s32.totalorder %s16, 3
    %p72 = por %p70, %p71
    %p74 = scmp.ne.s32.totalorder %s59, %s73
    %p75 = scmp.eq.s32.totalorder %s16, 0
    %p76 = por %p74, %p75
    %s78 = sadd.s32 %s77, 1
    %p81 = scmp.eq.s32.totalorder %s10, 3
    %p82 = scmp.ne.s32.totalorder %s77, %s79
    %p83 = scmp.eq.s32.totalorder %s10, 0
    %p84 = por %p82, %p83
    %p85 = scmp.ne.s32.totalorder %s77, %s79
    %p86 = scmp.eq.s32.totalorder %s15, 3
    %p87 = por %p85, %p86
    %p88 = scmp.ne.s32.totalorder %s79, %s80
    %p89 = scmp.eq.s32.totalorder %s15, 0
    %p90 = por %p88, %p89
    %p91 = scmp.ne.s32.totalorder %s79, %s80
    %p92 = scmp.eq.s32.totalorder %s16, 3
    %p93 = por %p91, %p92
    %p95 = scmp.ne.s32.totalorder %s80, %s94
    %p96 = scmp.eq.s32.totalorder %s16, 0
    %p97 = por %p95, %p96
    %s99 = sadd.s32 %s98, 1
    %p102 = scmp.eq.s32.totalorder %s10, 3
    %p103 = scmp.ne.s32.totalorder %s98, %s100
    %p104 = scmp.eq.s32.totalorder %s10, 0
    %p105 = por %p103, %p104
    %p106 = scmp.ne.s32.totalorder %s98, %s100
    %p107 = scmp.eq.s32.totalorder %s15, 3
    %p108 = por %p106, %p107
    %p109 = scmp.ne.s32.totalorder %s100, %s101
    %p110 = scmp.eq.s32.totalorder %s15, 0
    %p111 = por %p109, %p110
    %p112 = scmp.ne.s32.totalorder %s100, %s101
    %p113 = scmp.eq.s32.totalorder %s16, 3
    %p114 = por %p112, %p113
    %p116 = scmp.ne.s32.totalorder %s101, %s115
    %p117 = scmp.eq.s32.totalorder %s16, 0
    %p118 = por %p116, %p117
    %s119 = ssub.s32 %s17, %s29
    %s120 = ssub.s32 %s18, %s25
    %s121 = sor.u32 %s119, %s120
    %p122 = scmp.eq.s32.totalorder %s121, 0
    %s124 = sadd.s32 %s123, 1
    %s125 = scalar_select %p122, %s123, %s124
    %p128 = pneg %p122
    %p129 = scmp.eq.s32.totalorder %s10, 3
    %p130 = por %p128, %p129
    %p131 = scmp.ne.s32.totalorder %s123, %s126
    %p132 = scmp.eq.s32.totalorder %s10, 0
    %p133 = por %p131, %p132
    %p134 = scmp.ne.s32.totalorder %s123, %s126
    %p135 = scmp.eq.s32.totalorder %s15, 3
    %p136 = por %p134, %p135
    %p137 = scmp.ne.s32.totalorder %s126, %s127
    %p138 = scmp.eq.s32.totalorder %s15, 0
    %p139 = por %p137, %p138
    %p140 = scmp.ne.s32.totalorder %s126, %s127
    %p141 = scmp.eq.s32.totalorder %s16, 3
    %p142 = por %p140, %p141
    %p144 = scmp.ne.s32.totalorder %s127, %s143
    %p145 = scmp.eq.s32.totalorder %s16, 0
    %p146 = por %p144, %p145
    %p147 = scmp.le.s32.totalorder 1, %s10
    %p148 = scmp.lt.s32.totalorder %s10, 5
    %p149 = pnand %p147, %p148
    %p150 = pneg %p149
    // Predicated region
    $region9: #{conv_bn_relu.3} parent=5 // pred_check
      _
    $region10: #{conv_bn_relu.3} parent=5 // pred_check_branch
      %152 = sbr.rel (%p149) target = $region12
    $region11: #{conv_bn_relu.3} parent=5 // pred_region
      %s153 = ssub.s32 %s10, 1
      // Predicated region
      $region13: #{conv_bn_relu.3} parent=11 // pred_check
        %p154 = pneg %p69
      $region14: #{conv_bn_relu.3} parent=11 // pred_check_branch
        %156 = sbr.rel (%p154) target = $region16
      $region15: #{conv_bn_relu.3} parent=11 // pred_region
        _
      $region16: #{conv_bn_relu.3} parent=11 // pred_fallthru
        _
      // Predicated region
      $region17: #{conv_bn_relu.3} parent=11 // pred_check
        %p157 = pneg %p90
      $region18: #{conv_bn_relu.3} parent=11 // pred_check_branch
        %159 = sbr.rel (%p157) target = $region20
      $region19: #{conv_bn_relu.3} parent=11 // pred_region
        _
      $region20: #{conv_bn_relu.3} parent=11 // pred_fallthru
        _
      // Predicated region
      $region21: #{conv_bn_relu.3} parent=11 // pred_check
        %p160 = pneg %p111
      $region22: #{conv_bn_relu.3} parent=11 // pred_check_branch
        %162 = sbr.rel (%p160) target = $region24
      $region23: #{conv_bn_relu.3} parent=11 // pred_region
        _
      $region24: #{conv_bn_relu.3} parent=11 // pred_fallthru
        _
    $region12: #{conv_bn_relu.3} parent=5 // pred_fallthru
      _
    %p163 = scmp.lt.s32.totalorder %s10, 4
    // Predicated region
    $region25: #{conv_bn_relu.3} parent=5 // pred_check
      %p164 = pneg %p163
    $region26: #{conv_bn_relu.3} parent=5 // pred_check_branch
      %166 = sbr.rel (%p164) target = $region28
    $region27: #{conv_bn_relu.3} parent=5 // pred_region
      // Predicated region
      $region29: #{conv_bn_relu.3} parent=27 // pred_check
        %p167 = pneg %p42
      $region30: #{conv_bn_relu.3} parent=27 // pred_check_branch
        %169 = sbr.rel (%p167) target = $region32
      $region31: #{conv_bn_relu.3} parent=27 // pred_region
        %p170 = scmp.lt.s32.totalorder %s17, 1
        %s171 = scalar_select %p170, %s17, 1
        %s172 = smul.addr %s171, 36
        %s173 = smul.addr %s172, 4
        %s174 = scalar_lea.vmem %s0, %s173
      $region32: #{conv_bn_relu.3} parent=27 // pred_fallthru
        _
    $region28: #{conv_bn_relu.3} parent=5 // pred_fallthru
      _
    %p175 = scmp.le.s32.totalorder 1, %s10
    %p176 = scmp.lt.s32.totalorder %s10, 5
    %p177 = pnand %p175, %p176
    %p178 = pneg %p177
    // Predicated region
    $region33: #{conv_bn_relu.3} parent=5 // pred_check
      _
    $region34: #{conv_bn_relu.3} parent=5 // pred_check_branch
      %180 = sbr.rel (%p177) target = $region36
    $region35: #{conv_bn_relu.3} parent=5 // pred_region
      %s181 = ssub.s32 %s10, 1
      %p182 = scmp.lt.s32.totalorder %s19, 1
      %s183 = scalar_select %p182, %s19, 1
      %s184 = smul.addr %s183, 36
      %s185 = smul.addr %s184, 4
      %s186 = scalar_lea.vmem %s0, %s185
      %p187 = pneg %p48
      %p188 = pneg %p45
      %p189 = pneg %p69
      %p190 = pneg %p66
      %p191 = pneg %p90
      %p192 = pneg %p87
      %p193 = pneg %p111
      %p194 = pneg %p108
      %p195 = pneg %p139
      %p196 = pneg %p136
      %s197 = smul.u32 16, %s20
      %p198 = scmp.lt.s32.totalorder %s19, 1
      %s199 = scalar_select %p198, %s19, 1
      %p200 = scmp.lt.s32.totalorder %s197, 31
      %s201 = scalar_select %p200, %s197, 31
      %s202 = smul.addr %s199, 32
      %s203 = sadd.s32 %s201, %s202
      %s204 = smul.addr %s203, 4
      %s205 = scalar_lea.vmem %s4, %s204
      %p206 = scmp.lt.s32.totalorder %s19, 1
      %s207 = scalar_select %p206, %s19, 1
      %s208 = smul.addr %s207, 36
      %s209 = smul.addr %s208, 4
      %s210 = scalar_lea.vmem %s0, %s209
      %s211 = smul.u32 16, %s20
      %p212 = scmp.lt.s32.totalorder %s19, 1
      %s213 = scalar_select %p212, %s19, 1
      %p214 = scmp.lt.s32.totalorder %s211, 31
      %s215 = scalar_select %p214, %s211, 31
      %s216 = smul.addr %s213, 32
      %s217 = sadd.s32 %s215, %s216
      %s218 = smul.addr %s217, 4
      %s219 = scalar_lea.vmem %s4, %s218
      %s220 = smul.u32 16, %s20
      %s222 = smul.u32 %s20, 128
      %s223 = sshra.s32 %s222, 3
      %s224 = sand.u32 %s222, 7
      %s225 = smul.addr %s223, 4
      %s226 = scalar_lea.vmem %s210, %s225
      %v227 = vld [vmem:[%s226] sm:$0xf]
      %v228 = vld [vmem:[%s226 + $0x4] sm:$0xf]
      %v229 = vld [vmem:[%s226 + $0x8] sm:$0xf]
      %v230 = vld [vmem:[%s226 + $0xc] sm:$0xf]
      %v231 = vld [vmem:[%s226 + $0x10] sm:$0xf]
      %v232 = vld [vmem:[%s226 + $0x14] sm:$0xf]
      %v233 = vld [vmem:[%s226 + $0x18] sm:$0xf]
      %v234 = vld [vmem:[%s226 + $0x1c] sm:$0xf]
      %v235 = vld [vmem:[%s226 + $0x20] sm:$0xf]
      %v236 = vld [vmem:[%s226 + $0x24] sm:$0xf]
      %v237 = vld [vmem:[%s226 + $0x28] sm:$0xf]
      %v238 = vld [vmem:[%s226 + $0x2c] sm:$0xf]
      %v239 = vld [vmem:[%s226 + $0x30] sm:$0xf]
      %v240 = vld [vmem:[%s226 + $0x34] sm:$0xf]
      %v241 = vld [vmem:[%s226 + $0x38] sm:$0xf]
      %v242 = vld [vmem:[%s226 + $0x3c] sm:$0xf]
      %v243 = vld [vmem:[%s1] sm:$0xf]
      %v244 = vld [vmem:[%s1 + $0x4] sm:$0x3]
      %s245 = sadd.s32 %s222, 16
      %s246 = sshra.s32 %s245, 3
      %s247 = sand.u32 %s245, 7
      %s248 = smul.addr %s246, 4
      %s249 = scalar_lea.vmem %s210, %s248
      %v250 = vld [vmem:[%s249] sm:$0xf]
      %v251 = vld [vmem:[%s249 + $0x4] sm:$0xf]
      %v252 = vld [vmem:[%s249 + $0x8] sm:$0xf]
      %v253 = vld [vmem:[%s249 + $0xc] sm:$0xf]
      %v254 = vld [vmem:[%s249 + $0x10] sm:$0xf]
      %v255 = vld [vmem:[%s249 + $0x14] sm:$0xf]
      %v256 = vld [vmem:[%s249 + $0x18] sm:$0xf]
      %v257 = vld [vmem:[%s249 + $0x1c] sm:$0xf]
      %v258 = vld [vmem:[%s249 + $0x20] sm:$0xf]
      %v259 = vld [vmem:[%s249 + $0x24] sm:$0xf]
      %v260 = vld [vmem:[%s249 + $0x28] sm:$0xf]
      %v261 = vld [vmem:[%s249 + $0x2c] sm:$0xf]
      %v262 = vld [vmem:[%s249 + $0x30] sm:$0xf]
      %v263 = vld [vmem:[%s249 + $0x34] sm:$0xf]
      %v264 = vld [vmem:[%s249 + $0x38] sm:$0xf]
      %v265 = vld [vmem:[%s249 + $0x3c] sm:$0xf]
      %s266 = scalar_lea.vmem %s1, 8
      %v267 = vld [vmem:[%s266] sm:$0xf]
      %v268 = vld [vmem:[%s266 + $0x4] sm:$0x3]
      %v285 = vunpack.c.l.b16 %v250
      %v286 = vunpack.c.l.b16 %v251
      %v287 = vunpack.c.l.b16 %v252
      %v288 = vunpack.c.l.b16 %v253
      %v289 = vunpack.c.l.b16 %v254
      %v290 = vunpack.c.l.b16 %v255
      %v291 = vunpack.c.l.b16 %v256
      %v292 = vunpack.c.l.b16 %v257
      %v293 = vunpack.c.l.b16 %v258
      %v294 = vunpack.c.l.b16 %v259
      %v295 = vunpack.c.l.b16 %v260
      %v296 = vunpack.c.l.b16 %v261
      %v297 = vunpack.c.l.b16 %v262
      %v298 = vunpack.c.l.b16 %v263
      %v299 = vunpack.c.l.b16 %v264
      %v300 = vunpack.c.l.b16 %v265
      %v301 = vpack.c.b16 %v286, %v285
      %v302 = vpack.c.b16 %v288, %v287
      %v303 = vpack.c.b16 %v290, %v289
      %v304 = vpack.c.b16 %v292, %v291
      %v305 = vpack.c.b16 %v294, %v293
      %v306 = vpack.c.b16 %v296, %v295
      %v307 = vpack.c.b16 %v298, %v297
      %v308 = vpack.c.b16 %v300, %v299
      %v311 = vunpack.c.l.b16 %v267
      %v312 = vunpack.c.l.b16 %v268
      %v313 = vpack.c.b16 %v312, %v311
      %vm314 = vcmask 97280
      %v316 = vsel %vm314, %v301, 0
      %v319 = vsel %vm314, %v302, 0
      %v322 = vsel %vm314, %v303, 0
      %v325 = vsel %vm314, %v304, 0
      %v328 = vsel %vm314, %v305, 0
      %v331 = vsel %vm314, %v306, 0
      %v334 = vsel %vm314, %v307, 0
      %v337 = vsel %vm314, %v308, 0
      %vm339 = vcmask 1045504
      %v341 = vsel %vm339, %v313, 0
      %343 = vmatprep.subr.bf16.mxu0 0
      %344 = vmatpush1.bf16.msra.mxu0 %v341
      %345 = vmatprep.subr.bf16.mxu0 0
      %346 = vmatpush1.bf16.msra.mxu0 0
      %347 = vmatprep.subr.bf16.mxu0 0
      %348 = vmatpush1.bf16.msra.mxu0 0
      %349 = vmatprep.subr.bf16.mxu0 0
      %350 = vmatpush1.bf16.msra.mxu0 0
      %351 = vmatprep.subr.bf16.mxu0 0
      %352 = vmatpush1.bf16.msra.mxu0 0
      %353 = vmatprep.subr.bf16.mxu0 0
      %354 = vmatpush1.bf16.msra.mxu0 0
      %355 = vmatprep.subr.bf16.mxu0 0
      %356 = vmatpush1.bf16.msra.mxu0 0
      %357 = vmatprep.subr.bf16.mxu0 0
      %358 = vmatpush1.bf16.msra.mxu0 0
      %359 = vmatprep.subr.bf16.mxu0 0
      %360 = vmatpush1.bf16.msra.mxu0 0
      %361 = vmatprep.subr.bf16.mxu0 0
      %362 = vmatpush1.bf16.msra.mxu0 0
      %363 = vmatprep.subr.bf16.mxu0 0
      %364 = vmatpush1.bf16.msra.mxu0 0
      %365 = vmatprep.subr.bf16.mxu0 0
      %366 = vmatpush1.bf16.msra.mxu0 0
      %367 = vmatprep.subr.bf16.mxu0 0
      %368 = vmatpush1.bf16.msra.mxu0 0
      %369 = vmatprep.subr.bf16.mxu0 0
      %370 = vmatpush1.bf16.msra.mxu0 0
      %371 = vmatprep.subr.bf16.mxu0 0
      %372 = vmatpush1.bf16.msra.mxu0 0
      %373 = vmatprep.subr.bf16.mxu0 0
      %374 = vmatpush1.bf16.msra.mxu0 0
      %375 = vmatprep.mubr.bf16.mxu0 0
      %376 = vmatmul.mubr.bf16.gmra.mrb[0].mxu0 %v316
      %v377 = vpop.f32.mrb[0].mxu0
      %v378 = vadd.f32 0.0, %v377
      %v379 = vpop.f32.mrb[0].mxu0
      %v380 = vpop.f32.mrb[0].mxu0
      %v381 = vadd.f32 0.0, %v380
      %v382 = vpop.f32.mrb[0].mxu0
      %383 = vmatprep.mubr.bf16.mxu0 0
      %384 = vmatmul.mubr.bf16.gmra.mrb[0].mxu0 %v319
      %v385 = vpop.f32.mrb[0].mxu0
      %v386 = vadd.f32 0.0, %v385
      %v387 = vpop.f32.mrb[0].mxu0
      %v388 = vpop.f32.mrb[0].mxu0
      %v389 = vadd.f32 0.0, %v388
      %v390 = vpop.f32.mrb[0].mxu0
      %391 = vmatprep.mubr.bf16.mxu0 0
      %392 = vmatmul.mubr.bf16.gmra.mrb[0].mxu0 %v322
      %v393 = vpop.f32.mrb[0].mxu0
      %v394 = vadd.f32 0.0, %v393
      %v395 = vpop.f32.mrb[0].mxu0
      %v396 = vpop.f32.mrb[0].mxu0
      %v397 = vadd.f32 0.0, %v396
      %v398 = vpop.f32.mrb[0].mxu0
      %399 = vmatprep.mubr.bf16.mxu0 0
      %400 = vmatmul.mubr.bf16.gmra.mrb[0].mxu0 %v325
      %v401 = vpop.f32.mrb[0].mxu0
      %v402 = vadd.f32 0.0, %v401
      %v403 = vpop.f32.mrb[0].mxu0
      %v404 = vpop.f32.mrb[0].mxu0
      %v405 = vadd.f32 0.0, %v404
      %v406 = vpop.f32.mrb[0].mxu0
      %407 = vmatprep.mubr.bf16.mxu0 0
      %408 = vmatmul.mubr.bf16.gmra.mrb[0].mxu0 %v328
      %v409 = vpop.f32.mrb[0].mxu0
      %v410 = vadd.f32 0.0, %v409
      %v411 = vpop.f32.mrb[0].mxu0
      %v412 = vpop.f32.mrb[0].mxu0
      %v413 = vadd.f32 0.0, %v412
      %v414 = vpop.f32.mrb[0].mxu0
      %415 = vmatprep.mubr.bf16.mxu0 0
      %416 = vmatmul.mubr.bf16.gmra.mrb[0].mxu0 %v331
      %v417 = vpop.f32.mrb[0].mxu0
      %v418 = vadd.f32 0.0, %v417
      %v419 = vpop.f32.mrb[0].mxu0
      %v420 = vpop.f32.mrb[0].mxu0
      %v421 = vadd.f32 0.0, %v420
      %v422 = vpop.f32.mrb[0].mxu0
      %423 = vmatprep.mubr.bf16.mxu0 0
      %424 = vmatmul.mubr.bf16.gmra.mrb[0].mxu0 %v334
      %v425 = vpop.f32.mrb[0].mxu0
      %v426 = vadd.f32 0.0, %v425
      %v427 = vpop.f32.mrb[0].mxu0
      %v428 = vpop.f32.mrb[0].mxu0
      %v429 = vadd.f32 0.0, %v428
      %v430 = vpop.f32.mrb[0].mxu0
      %431 = vmatprep.mubr.bf16.mxu0 0
      %432 = vmatmul.mubr.bf16.gmra.mrb[0].mxu0 %v337
      %v433 = vpop.f32.mrb[0].mxu0
      %v434 = vadd.f32 0.0, %v433
      %v435 = vpop.f32.mrb[0].mxu0
      %v436 = vpop.f32.mrb[0].mxu0
      %v437 = vadd.f32 0.0, %v436
      %v438 = vpop.f32.mrb[0].mxu0
      %439 = vdwg.mxu0
      %v456 = vunpack.c.l.b16 %v227
      %v457 = vunpack.c.l.b16 %v228
      %v458 = vunpack.c.l.b16 %v229
      %v459 = vunpack.c.l.b16 %v230
      %v460 = vunpack.c.l.b16 %v231
      %v461 = vunpack.c.l.b16 %v232
      %v462 = vunpack.c.l.b16 %v233
      %v463 = vunpack.c.l.b16 %v234
      %v464 = vunpack.c.l.b16 %v235
      %v465 = vunpack.c.l.b16 %v236
      %v466 = vunpack.c.l.b16 %v237
      %v467 = vunpack.c.l.b16 %v238
      %v468 = vunpack.c.l.b16 %v239
      %v469 = vunpack.c.l.b16 %v240
      %v470 = vunpack.c.l.b16 %v241
      %v471 = vunpack.c.l.b16 %v242
      %v472 = vpack.c.b16 %v457, %v456
      %v473 = vpack.c.b16 %v459, %v458
      %v474 = vpack.c.b16 %v461, %v460
      %v475 = vpack.c.b16 %v463, %v462
      %v476 = vpack.c.b16 %v465, %v464
      %v477 = vpack.c.b16 %v467, %v466
      %v478 = vpack.c.b16 %v469, %v468
      %v479 = vpack.c.b16 %v471, %v470
      %v482 = vunpack.c.l.b16 %v243
      %v483 = vunpack.c.l.b16 %v244
      %v484 = vpack.c.b16 %v483, %v482
      %v486 = vsel %vm314, %v472, 0
      %v489 = vsel %vm314, %v473, 0
      %v492 = vsel %vm314, %v474, 0
      %v495 = vsel %vm314, %v475, 0
      %v498 = vsel %vm314, %v476, 0
      %v501 = vsel %vm314, %v477, 0
      %v504 = vsel %vm314, %v478, 0
      %v507 = vsel %vm314, %v479, 0
      %v510 = vsel %vm339, %v484, 0
      %512 = vmatprep.subr.bf16.mxu0 0
      %513 = vmatpush1.bf16.msra.mxu0 %v510
      %514 = vmatprep.subr.bf16.mxu0 0
      %515 = vmatpush1.bf16.msra.mxu0 0
      %516 = vmatprep.subr.bf16.mxu0 0
      %517 = vmatpush1.bf16.msra.mxu0 0
      %518 = vmatprep.subr.bf16.mxu0 0
      %519 = vmatpush1.bf16.msra.mxu0 0
      %520 = vmatprep.subr.bf16.mxu0 0
      %521 = vmatpush1.bf16.msra.mxu0 0
      %522 = vmatprep.subr.bf16.mxu0 0
      %523 = vmatpush1.bf16.msra.mxu0 0
      %524 = vmatprep.subr.bf16.mxu0 0
      %525 = vmatpush1.bf16.msra.mxu0 0
      %526 = vmatprep.subr.bf16.mxu0 0
      %527 = vmatpush1.bf16.msra.mxu0 0
      %528 = vmatprep.subr.bf16.mxu0 0
      %529 = vmatpush1.bf16.msra.mxu0 0
      %530 = vmatprep.subr.bf16.mxu0 0
      %531 = vmatpush1.bf16.msra.mxu0 0
      %532 = vmatprep.subr.bf16.mxu0 0
      %533 = vmatpush1.bf16.msra.mxu0 0
      %534 = vmatprep.subr.bf16.mxu0 0
      %535 = vmatpush1.bf16.msra.mxu0 0
      %536 = vmatprep.subr.bf16.mxu0 0
      %537 = vmatpush1.bf16.msra.mxu0 0
      %538 = vmatprep.subr.bf16.mxu0 0
      %539 = vmatpush1.bf16.msra.mxu0 0
      %540 = vmatprep.subr.bf16.mxu0 0
      %541 = vmatpush1.bf16.msra.mxu0 0
      %542 = vmatprep.subr.bf16.mxu0 0
      %543 = vmatpush1.bf16.msra.mxu0 0
      %544 = vmatprep.mubr.bf16.mxu0 0
      %545 = vmatmul.mubr.bf16.gmra.mrb[0].mxu0 %v486
      %v546 = vpop.f32.mrb[0].mxu0
      %v547 = vadd.f32 %v378, %v546
      %v548 = vpop.f32.mrb[0].mxu0
      %v549 = vpop.f32.mrb[0].mxu0
      %v550 = vadd.f32 %v381, %v549
      %v551 = vpop.f32.mrb[0].mxu0
      %552 = vmatprep.mubr.bf16.mxu0 0
      %553 = vmatmul.mubr.bf16.gmra.mrb[0].mxu0 %v489
      %v554 = vpop.f32.mrb[0].mxu0
      %v555 = vadd.f32 %v386, %v554
      %v556 = vpop.f32.mrb[0].mxu0
      %v557 = vpop.f32.mrb[0].mxu0
      %v558 = vadd.f32 %v389, %v557
      %v559 = vpop.f32.mrb[0].mxu0
      %560 = vmatprep.mubr.bf16.mxu0 0
      %561 = vmatmul.mubr.bf16.gmra.mrb[0].mxu0 %v492
      %v562 = vpop.f32.mrb[0].mxu0
      %v563 = vadd.f32 %v394, %v562
      %v564 = vpop.f32.mrb[0].mxu0
      %v565 = vpop.f32.mrb[0].mxu0
      %v566 = vadd.f32 %v397, %v565
      %v567 = vpop.f32.mrb[0].mxu0
      %568 = vmatprep.mubr.bf16.mxu0 0
      %569 = vmatmul.mubr.bf16.gmra.mrb[0].mxu0 %v495
      %v570 = vpop.f32.mrb[0].mxu0
      %v571 = vadd.f32 %v402, %v570
      %v572 = vpop.f32.mrb[0].mxu0
      %v573 = vpop.f32.mrb[0].mxu0
      %v574 = vadd.f32 %v405, %v573
      %v575 = vpop.f32.mrb[0].mxu0
      %576 = vmatprep.mubr.bf16.mxu0 0
      %577 = vmatmul.mubr.bf16.gmra.mrb[0].mxu0 %v498
      %v578 = vpop.f32.mrb[0].mxu0
      %v579 = vadd.f32 %v410, %v578
      %v580 = vpop.f32.mrb[0].mxu0
      %v581 = vpop.f32.mrb[0].mxu0
      %v582 = vadd.f32 %v413, %v581
      %v583 = vpop.f32.mrb[0].mxu0
      %584 = vmatprep.mubr.bf16.mxu0 0
      %585 = vmatmul.mubr.bf16.gmra.mrb[0].mxu0 %v501
      %v586 = vpop.f32.mrb[0].mxu0
      %v587 = vadd.f32 %v418, %v586
      %v588 = vpop.f32.mrb[0].mxu0
      %v589 = vpop.f32.mrb[0].mxu0
      %v590 = vadd.f32 %v421, %v589
      %v591 = vpop.f32.mrb[0].mxu0
      %592 = vmatprep.mubr.bf16.mxu0 0
      %593 = vmatmul.mubr.bf16.gmra.mrb[0].mxu0 %v504
      %v594 = vpop.f32.mrb[0].mxu0
      %v595 = vadd.f32 %v426, %v594
      %v596 = vpop.f32.mrb[0].mxu0
      %v597 = vpop.f32.mrb[0].mxu0
      %v598 = vadd.f32 %v429, %v597
      %v599 = vpop.f32.mrb[0].mxu0
      %600 = vmatprep.mubr.bf16.mxu0 0
      %601 = vmatmul.mubr.bf16.gmra.mrb[0].mxu0 %v507
      %v602 = vpop.f32.mrb[0].mxu0
      %v603 = vadd.f32 %v434, %v602
      %v604 = vpop.f32.mrb[0].mxu0
      %v605 = vpop.f32.mrb[0].mxu0
      %v606 = vadd.f32 %v437, %v605
      %v607 = vpop.f32.mrb[0].mxu0
      %608 = vdwg.mxu0
      %s609 = sadd.s32 %s222, 32
      %s610 = sshra.s32 %s609, 3
      %s611 = sand.u32 %s609, 7
      %s612 = smul.addr %s610, 4
      %s613 = scalar_lea.vmem %s210, %s612
      %v614 = vld [vmem:[%s613] sm:$0xf]
      %v615 = vld [vmem:[%s613 + $0x4] sm:$0xf]
      %v616 = vld [vmem:[%s613 + $0x8] sm:$0xf]
      %v617 = vld [vmem:[%s613 + $0xc] sm:$0xf]
      %v618 = vld [vmem:[%s613 + $0x10] sm:$0xf]
      %v619 = vld [vmem:[%s613 + $0x14] sm:$0xf]
      %v620 = vld [vmem:[%s613 + $0x18] sm:$0xf]
      %v621 = vld [vmem:[%s613 + $0x1c] sm:$0xf]
      %v622 = vld [vmem:[%s613 + $0x20] sm:$0xf]
      %v623 = vld [vmem:[%s613 + $0x24] sm:$0xf]
      %v624 = vld [vmem:[%s613 + $0x28] sm:$0xf]
      %v625 = vld [vmem:[%s613 + $0x2c] sm:$0xf]
      %v626 = vld [vmem:[%s613 + $0x30] sm:$0xf]
      %v627 = vld [vmem:[%s613 + $0x34] sm:$0xf]
      %v628 = vld [vmem:[%s613 + $0x38] sm:$0xf]
      %v629 = vld [vmem:[%s613 + $0x3c] sm:$0xf]
      %s630 = scalar_lea.vmem %s1, 16
      %v631 = vld [vmem:[%s630] sm:$0xf]
      %v632 = vld [vmem:[%s630 + $0x4] sm:$0x3]
      %v649 = vunpack.c.l.b16 %v614
      %v650 = vunpack.c.l.b16 %v615
      %v651 = vunpack.c.l.b16 %v616
      %v652 = vunpack.c.l.b16 %v617
      %v653 = vunpack.c.l.b16 %v618
      %v654 = vunpack.c.l.b16 %v619
      %v655 = vunpack.c.l.b16 %v620
      %v656 = vunpack.c.l.b16 %v621
      %v657 = vunpack.c.l.b16 %v622
      %v658 = vunpack.c.l.b16 %v623
      %v659 = vunpack.c.l.b16 %v624
      %v660 = vunpack.c.l.b16 %v625
      %v661 = vunpack.c.l.b16 %v626
      %v662 = vunpack.c.l.b16 %v627
      %v663 = vunpack.c.l.b16 %v628
      %v664 = vunpack.c.l.b16 %v629
      %v665 = vpack.c.b16 %v650, %v649
      %v666 = vpack.c.b16 %v652, %v651
      %v667 = vpack.c.b16 %v654, %v653
      %v668 = vpack.c.b16 %v656, %v655
      %v669 = vpack.c.b16 %v658, %v657
      %v670 = vpack.c.b16 %v660, %v659
      %v671 = vpack.c.b16 %v662, %v661
      %v672 = vpack.c.b16 %v664, %v663
      %v675 = vunpack.c.l.b16 %v631
      %v676 = vunpack.c.l.b16 %v632
      %v677 = vpack.c.b16 %v676, %v675
      %v679 = vsel %vm314, %v665, 0
      %v682 = vsel %vm314, %v666, 0
      %v685 = vsel %vm314, %v667, 0
      %v688 = vsel %vm314, %v668, 0
      %v691 = vsel %vm314, %v669, 0
      %v694 = vsel %vm314, %v670, 0
      %v697 = vsel %vm314, %v671, 0
      %v700 = vsel %vm314, %v672, 0
      %v703 = vsel %vm339, %v677, 0
      %705 = vmatprep.subr.bf16.mxu0 0
      %706 = vmatpush1.bf16.msra.mxu0 %v703
      %707 = vmatprep.subr.bf16.mxu0 0
      %708 = vmatpush1.bf16.msra.mxu0 0
      %709 = vmatprep.subr.bf16.mxu0 0
      %710 = vmatpush1.bf16.msra.mxu0 0
      %711 = vmatprep.subr.bf16.mxu0 0
      %712 = vmatpush1.bf16.msra.mxu0 0
      %713 = vmatprep.subr.bf16.mxu0 0
      %714 = vmatpush1.bf16.msra.mxu0 0
      %715 = vmatprep.subr.bf16.mxu0 0
      %716 = vmatpush1.bf16.msra.mxu0 0
      %717 = vmatprep.subr.bf16.mxu0 0
      %718 = vmatpush1.bf16.msra.mxu0 0
      %719 = vmatprep.subr.bf16.mxu0 0
      %720 = vmatpush1.bf16.msra.mxu0 0
      %721 = vmatprep.subr.bf16.mxu0 0
      %722 = vmatpush1.bf16.msra.mxu0 0
      %723 = vmatprep.subr.bf16.mxu0 0
      %724 = vmatpush1.bf16.msra.mxu0 0
      %725 = vmatprep.subr.bf16.mxu0 0
      %726 = vmatpush1.bf16.msra.mxu0 0
      %727 = vmatprep.subr.bf16.mxu0 0
      %728 = vmatpush1.bf16.msra.mxu0 0
      %729 = vmatprep.subr.bf16.mxu0 0
      %730 = vmatpush1.bf16.msra.mxu0 0
      %731 = vmatprep.subr.bf16.mxu0 0
      %732 = vmatpush1.bf16.msra.mxu0 0
      %733 = vmatprep.subr.bf16.mxu0 0
      %734 = vmatpush1.bf16.msra.mxu0 0
      %735 = vmatprep.subr.bf16.mxu0 0
      %736 = vmatpush1.bf16.msra.mxu0 0
      %737 = vmatprep.mubr.bf16.mxu0 0
      %738 = vmatmul.mubr.bf16.gmra.mrb[0].mxu0 %v679
      %v739 = vpop.f32.mrb[0].mxu0
      %v740 = vadd.f32 0.0, %v739
      %v741 = vpop.f32.mrb[0].mxu0
      %v742 = vpop.f32.mrb[0].mxu0
      %v743 = vadd.f32 0.0, %v742
      %v744 = vpop.f32.mrb[0].mxu0
      %745 = vmatprep.mubr.bf16.mxu0 0
      %746 = vmatmul.mubr.bf16.gmra.mrb[0].mxu0 %v682
      %v747 = vpop.f32.mrb[0].mxu0
      %v748 = vadd.f32 0.0, %v747
      %v749 = vpop.f32.mrb[0].mxu0
      %v750 = vpop.f32.mrb[0].mxu0
      %v751 = vadd.f32 0.0, %v750
      %v752 = vpop.f32.mrb[0].mxu0
      %753 = vmatprep.mubr.bf16.mxu0 0
      %754 = vmatmul.mubr.bf16.gmra.mrb[0].mxu0 %v685
      %v755 = vpop.f32.mrb[0].mxu0
      %v756 = vadd.f32 0.0, %v755
      %v757 = vpop.f32.mrb[0].mxu0
      %v758 = vpop.f32.mrb[0].mxu0
      %v759 = vadd.f32 0.0, %v758
      %v760 = vpop.f32.mrb[0].mxu0
      %761 = vmatprep.mubr.bf16.mxu0 0
      %762 = vmatmul.mubr.bf16.gmra.mrb[0].mxu0 %v688
      %v763 = vpop.f32.mrb[0].mxu0
      %v764 = vadd.f32 0.0, %v763
      %v765 = vpop.f32.mrb[0].mxu0
      %v766 = vpop.f32.mrb[0].mxu0
      %v767 = vadd.f32 0.0, %v766
      %v768 = vpop.f32.mrb[0].mxu0
      %769 = vmatprep.mubr.bf16.mxu0 0
      %770 = vmatmul.mubr.bf16.gmra.mrb[0].mxu0 %v691
      %v771 = vpop.f32.mrb[0].mxu0
      %v772 = vadd.f32 0.0, %v771
      %v773 = vpop.f32.mrb[0].mxu0
      %v774 = vpop.f32.mrb[0].mxu0
      %v775 = vadd.f32 0.0, %v774
      %v776 = vpop.f32.mrb[0].mxu0
      %777 = vmatprep.mubr.bf16.mxu0 0
      %778 = vmatmul.mubr.bf16.gmra.mrb[0].mxu0 %v694
      %v779 = vpop.f32.mrb[0].mxu0
      %v780 = vadd.f32 0.0, %v779
      %v781 = vpop.f32.mrb[0].mxu0
      %v782 = vpop.f32.mrb[0].mxu0
      %v783 = vadd.f32 0.0, %v782
      %v784 = vpop.f32.mrb[0].mxu0
      %785 = vmatprep.mubr.bf16.mxu0 0
      %786 = vmatmul.mubr.bf16.gmra.mrb[0].mxu0 %v697
      %v787 = vpop.f32.mrb[0].mxu0
      %v788 = vadd.f32 0.0, %v787
      %v789 = vpop.f32.mrb[0].mxu0
      %v790 = vpop.f32.mrb[0].mxu0
      %v791 = vadd.f32 0.0, %v790
      %v792 = vpop.f32.mrb[0].mxu0
      %793 = vmatprep.mubr.bf16.mxu0 0
      %794 = vmatmul.mubr.bf16.gmra.mrb[0].mxu0 %v700
      %v795 = vpop.f32.mrb[0].mxu0
      %v796 = vadd.f32 0.0, %v795
      %v797 = vpop.f32.mrb[0].mxu0
      %v798 = vpop.f32.mrb[0].mxu0
      %v799 = vadd.f32 0.0, %v798
      %v800 = vpop.f32.mrb[0].mxu0
      %801 = vdwg.mxu0
      %v802 = vadd.f32 %v547, %v740
      %v803 = vadd.f32 %v550, %v743
      %v804 = vadd.f32 %v555, %v748
      %v805 = vadd.f32 %v558, %v751
      %v806 = vadd.f32 %v563, %v756
      %v807 = vadd.f32 %v566, %v759
      %v808 = vadd.f32 %v571, %v764
      %v809 = vadd.f32 %v574, %v767
      %v810 = vadd.f32 %v579, %v772
      %v811 = vadd.f32 %v582, %v775
      %v812 = vadd.f32 %v587, %v780
      %v813 = vadd.f32 %v590, %v783
      %v814 = vadd.f32 %v595, %v788
      %v815 = vadd.f32 %v598, %v791
      %v816 = vadd.f32 %v603, %v796
      %v817 = vadd.f32 %v606, %v799
      %v818 = vld [vmem:[%s2] sm:$0x1]
      %v820 = vlaneseq
      %v821 = vshrl.u32 %v820, 7
      %v822 = vsub.s32 0, %v821
      %v823 = vrot.slane %v818, %v822
      %v825 = vmul.f32 %v802, %v823
      %v826 = vmul.f32 %v803, %v823
      %v827 = vmul.f32 %v804, %v823
      %v828 = vmul.f32 %v805, %v823
      %v829 = vmul.f32 %v806, %v823
      %v830 = vmul.f32 %v807, %v823
      %v831 = vmul.f32 %v808, %v823
      %v832 = vmul.f32 %v809, %v823
      %v833 = vmul.f32 %v810, %v823
      %v834 = vmul.f32 %v811, %v823
      %v835 = vmul.f32 %v812, %v823
      %v836 = vmul.f32 %v813, %v823
      %v837 = vmul.f32 %v814, %v823
      %v838 = vmul.f32 %v815, %v823
      %v839 = vmul.f32 %v816, %v823
      %v840 = vmul.f32 %v817, %v823
      %v841 = vld [vmem:[%s3] sm:$0x1]
      %v843 = vlaneseq
      %v844 = vshrl.u32 %v843, 7
      %v845 = vsub.s32 0, %v844
      %v846 = vrot.slane %v841, %v845
      %v848 = vadd.f32 %v825, %v846
      %v849 = vadd.f32 %v826, %v846
      %v850 = vadd.f32 %v827, %v846
      %v851 = vadd.f32 %v828, %v846
      %v852 = vadd.f32 %v829, %v846
      %v853 = vadd.f32 %v830, %v846
      %v854 = vadd.f32 %v831, %v846
      %v855 = vadd.f32 %v832, %v846
      %v856 = vadd.f32 %v833, %v846
      %v857 = vadd.f32 %v834, %v846
      %v858 = vadd.f32 %v835, %v846
      %v859 = vadd.f32 %v836, %v846
      %v860 = vadd.f32 %v837, %v846
      %v861 = vadd.f32 %v838, %v846
      %v862 = vadd.f32 %v839, %v846
      %v863 = vadd.f32 %v840, %v846
      %v864 = vmax.f32 %v848, 0.0
      %v865 = vmax.f32 %v849, 0.0
      %v866 = vmax.f32 %v850, 0.0
      %v867 = vmax.f32 %v851, 0.0
      %v868 = vmax.f32 %v852, 0.0
      %v869 = vmax.f32 %v853, 0.0
      %v870 = vmax.f32 %v854, 0.0
      %v871 = vmax.f32 %v855, 0.0
      %v872 = vmax.f32 %v856, 0.0
      %v873 = vmax.f32 %v857, 0.0
      %v874 = vmax.f32 %v858, 0.0
      %v875 = vmax.f32 %v859, 0.0
      %v876 = vmax.f32 %v860, 0.0
      %v877 = vmax.f32 %v861, 0.0
      %v878 = vmax.f32 %v862, 0.0
      %v879 = vmax.f32 %v863, 0.0
      %v880 = vpack.c.bf16 %v865, %v864
      %v881 = vpack.c.bf16 %v867, %v866
      %v882 = vpack.c.bf16 %v869, %v868
      %v883 = vpack.c.bf16 %v871, %v870
      %v884 = vpack.c.bf16 %v873, %v872
      %v885 = vpack.c.bf16 %v875, %v874
      %v886 = vpack.c.bf16 %v877, %v876
      %v887 = vpack.c.bf16 %v879, %v878
      %v896 = vunpack.c.l.b16 %v880
      %v897 = vunpack.c.h.b16 %v880
      %v898 = vunpack.c.l.b16 %v881
      %v899 = vunpack.c.h.b16 %v881
      %v900 = vunpack.c.l.b16 %v882
      %v901 = vunpack.c.h.b16 %v882
      %v902 = vunpack.c.l.b16 %v883
      %v903 = vunpack.c.h.b16 %v883
      %v904 = vunpack.c.l.b16 %v884
      %v905 = vunpack.c.h.b16 %v884
      %v906 = vunpack.c.l.b16 %v885
      %v907 = vunpack.c.h.b16 %v885
      %v908 = vunpack.c.l.b16 %v886
      %v909 = vunpack.c.h.b16 %v886
      %v910 = vunpack.c.l.b16 %v887
      %v911 = vunpack.c.h.b16 %v887
      %v912 = vpack.c.b16 %v896, %v896
      %v913 = vpack.c.b16 %v897, %v897
      %v914 = vpack.c.b16 %v898, %v898
      %v915 = vpack.c.b16 %v899, %v899
      %v916 = vpack.c.b16 %v900, %v900
      %v917 = vpack.c.b16 %v901, %v901
      %v918 = vpack.c.b16 %v902, %v902
      %v919 = vpack.c.b16 %v903, %v903
      %v920 = vpack.c.b16 %v904, %v904
      %v921 = vpack.c.b16 %v905, %v905
      %v922 = vpack.c.b16 %v906, %v906
      %v923 = vpack.c.b16 %v907, %v907
      %v924 = vpack.c.b16 %v908, %v908
      %v925 = vpack.c.b16 %v909, %v909
      %v926 = vpack.c.b16 %v910, %v910
      %v927 = vpack.c.b16 %v911, %v911
      %944 = vst [vmem:[%s219] sm:$0xf] %v912
      %945 = vst [vmem:[%s219 + $0x4] sm:$0xf] %v913
      %946 = vst [vmem:[%s219 + $0x8] sm:$0xf] %v914
      %947 = vst [vmem:[%s219 + $0xc] sm:$0xf] %v915
      %948 = vst [vmem:[%s219 + $0x10] sm:$0xf] %v916
      %949 = vst [vmem:[%s219 + $0x14] sm:$0xf] %v917
      %950 = vst [vmem:[%s219 + $0x18] sm:$0xf] %v918
      %951 = vst [vmem:[%s219 + $0x1c] sm:$0xf] %v919
      %952 = vst [vmem:[%s219 + $0x20] sm:$0xf] %v920
      %953 = vst [vmem:[%s219 + $0x24] sm:$0xf] %v921
      %954 = vst [vmem:[%s219 + $0x28] sm:$0xf] %v922
      %955 = vst [vmem:[%s219 + $0x2c] sm:$0xf] %v923
      %956 = vst [vmem:[%s219 + $0x30] sm:$0xf] %v924
      %957 = vst [vmem:[%s219 + $0x34] sm:$0xf] %v925
      %958 = vst [vmem:[%s219 + $0x38] sm:$0xf] %v926
      %959 = vst [vmem:[%s219 + $0x3c] sm:$0xf] %v927
      %s960 = smul.u32 16, %s20
      %p961 = scmp.lt.s32.totalorder %s19, 1
      %s962 = scalar_select %p961, %s19, 1
      %p963 = scmp.lt.s32.totalorder %s960, 31
      %s964 = scalar_select %p963, %s960, 31
      %s965 = smul.addr %s962, 32
      %s966 = sadd.s32 %s964, %s965
      %s967 = smul.addr %s966, 4
      %s968 = scalar_lea.vmem %s4, %s967
      // Predicated region
      $region37: #{conv_bn_relu.3} parent=35 // pred_check
        %p969 = pneg %p136
      $region38: #{conv_bn_relu.3} parent=35 // pred_check_branch
        %971 = sbr.rel (%p969) target = $region40
      $region39: #{conv_bn_relu.3} parent=35 // pred_region
        %s972 = smul.u32 16, %s20
      $region40: #{conv_bn_relu.3} parent=35 // pred_fallthru
        _
    $region36: #{conv_bn_relu.3} parent=5 // pred_fallthru
      _
    %p973 = scmp.le.s32.totalorder 2, %s10
    // Predicated region
    $region41: #{conv_bn_relu.3} parent=5 // pred_check
      %p974 = pneg %p973
    $region42: #{conv_bn_relu.3} parent=5 // pred_check_branch
      %976 = sbr.rel (%p974) target = $region44
    $region43: #{conv_bn_relu.3} parent=5 // pred_region
      %s977 = ssub.s32 %s10, 2
      // Predicated region
      $region45: #{conv_bn_relu.3} parent=43 // pred_check
        %p978 = pneg %p142
      $region46: #{conv_bn_relu.3} parent=43 // pred_check_branch
        %980 = sbr.rel (%p978) target = $region48
      $region47: #{conv_bn_relu.3} parent=43 // pred_region
        %s981 = smul.u32 16, %s22
        %p982 = scmp.lt.s32.totalorder %s21, 1
        %s983 = scalar_select %p982, %s21, 1
        %p984 = scmp.lt.s32.totalorder %s981, 31
        %s985 = scalar_select %p984, %s981, 31
        %s986 = smul.addr %s983, 32
        %s987 = sadd.s32 %s985, %s986
        %s988 = smul.addr %s987, 4
        %s989 = scalar_lea.vmem %s4, %s988
      $region48: #{conv_bn_relu.3} parent=43 // pred_fallthru
        _
    $region44: #{conv_bn_relu.3} parent=5 // pred_fallthru
      _
  $region6: #{conv_bn_relu.3} parent=0 // loop_footer
    %s14 = sadd.s32 1, %s10
  $region7: #{conv_bn_relu.3} parent=0 // loop_footer_branch
    %9 = sbr.rel target = $region3
  $region8: #{conv_bn_relu.3} parent=0 // loop_exit
    _

</llo_original>
